<compile_context>
chip_gen: v5e
topology: v5e:2x2
jax: 0.10.0
libtpu: 0.0.40
codegen_flags: <defaults>
</compile_context>

<pallas_src>
import functools

import numpy as np
import jax
import jax.numpy as jnp
from jax import lax
from jax.experimental import pallas as pl
from jax.experimental.pallas import tpu as pltpu

EPS = 1e-5
# 3x3 tap offsets (dy-1, dx-1) with t = dy*3 + dx -- must match the weight
# reshape (Co, dy, dx, Ci) -> (Co, 9*Ci) used in the wrapper.
OFFSETS = tuple((dy - 1, dx - 1) for dy in range(3) for dx in range(3))


def _basic_block_kernel(x_ref, m_ref, w1_ref, g1_ref, b1_ref,
                        w2_ref, g2_ref, b2_ref, o_ref, patches_ref, *, width):
    # x_ref      : (Cin, N*H*W)  f32   input, channel-major / flat space
    # m_ref      : (9,   N*H*W)  bf16  0/1 boundary-validity mask per tap
    # w1_ref     : (Co, 9*Cin)   bf16  conv1 weight, im2col layout
    # w2_ref     : (Co, 9*Co)    bf16  conv2 weight, im2col layout
    # g*/b*_ref  : (Co, 1)       f32   BatchNorm affine parameters
    # o_ref      : (Co, N*H*W)   f32   output (lane-dense store)
    # patches_ref: (9*Co, N*H*W) bf16  VMEM scratch holding the im2col patches
    cin, nhw = x_ref.shape
    inv_cnt = 1.0 / nhw

    xf = x_ref[...]                  # f32, reused untouched for the residual
    masks = m_ref[...]               # (9, nhw) bf16

    def conv3x3(act_bf, w_ref_):
        # Assemble the (9*C, N*H*W) patch matrix in VMEM, then a single fat
        # bf16 MXU dot with f32 accumulation (K = 9*C instead of 9 thin dots).
        c = act_bf.shape[0]
        for t, (oy, ox) in enumerate(OFFSETS):
            s = oy * width + ox                       # flat shift of this tap
            r0, r1 = t * c, (t + 1) * c
            if s == 0:
                patches_ref[r0:r1, :] = act_bf        # centre tap: mask == 1
            elif s > 0:
                patches_ref[r0:r1, 0:nhw - s] = (
                    act_bf[:, s:] * masks[t:t + 1, 0:nhw - s])
                patches_ref[r0:r1, nhw - s:] = jnp.zeros((c, s), jnp.bfloat16)
            else:  # s < 0
                patches_ref[r0:r1, -s:] = (
                    act_bf[:, 0:nhw + s] * masks[t:t + 1, -s:])
                patches_ref[r0:r1, 0:-s] = jnp.zeros((c, -s), jnp.bfloat16)
        return jnp.dot(w_ref_[...], patches_ref[...],
                       preferred_element_type=jnp.float32)

    def batchnorm(a, g_ref_, b_ref_):
        # Per-channel batch stats over the flat N*H*W (lane) axis; `a` stays
        # resident in vregs so sum and sum-of-squares share a single pass.
        ssum = jnp.sum(a, axis=1, keepdims=True)
        ssq = jnp.sum(a * a, axis=1, keepdims=True)
        mean = ssum * inv_cnt
        var = ssq * inv_cnt - mean * mean
        return (a - mean) * lax.rsqrt(var + EPS) * g_ref_[...] + b_ref_[...]

    a1 = conv3x3(xf.astype(jnp.bfloat16), w1_ref)             # conv1
    hid = jnp.maximum(batchnorm(a1, g1_ref, b1_ref), 0.0)     # bn1 + relu (f32)
    a2 = conv3x3(hid.astype(jnp.bfloat16), w2_ref)            # conv2
    out = batchnorm(a2, g2_ref, b2_ref) + xf                  # bn2 + residual
    o_ref[...] = jnp.maximum(out, 0.0)                        # final relu


def basic_block(x_nchw, w1, g1, b1, w2, g2, b2):
    """x_nchw: (N, C, H, W) f32; conv weights in PyTorch layout (Co, Ci, 3, 3)."""
    n, cin, hh, ww = x_nchw.shape
    co = w1.shape[0]
    if cin != co:
        raise ValueError("identity shortcut requires in_channels == out_channels")
    nhw = n * hh * ww

    # Channel-major, flattened-space layout: (C, N*H*W).
    xf = jnp.transpose(x_nchw, (1, 0, 2, 3)).reshape(cin, nhw)

    # (Co, Ci, 3, 3) -> (Co, 3, 3, Ci) -> (Co, 9*Ci); row block t = dy*3 + dx.
    w1m = jnp.transpose(w1, (0, 2, 3, 1)).reshape(co, 9 * cin).astype(jnp.bfloat16)
    w2m = jnp.transpose(w2, (0, 2, 3, 1)).reshape(co, 9 * co).astype(jnp.bfloat16)

    # 0/1 boundary-validity mask per tap (replaces all spatial zero padding).
    ys, xs = np.arange(hh), np.arange(ww)
    masks_np = np.zeros((9, hh, ww), np.float32)
    for t, (oy, ox) in enumerate(OFFSETS):
        vy = (ys + oy >= 0) & (ys + oy < hh)
        vx = (xs + ox >= 0) & (xs + ox < ww)
        masks_np[t] = vy[:, None] & vx[None, :]
    masks = jnp.asarray(
        np.broadcast_to(masks_np[:, None], (9, n, hh, ww)).reshape(9, nhw),
        dtype=jnp.bfloat16)

    kernel = functools.partial(_basic_block_kernel, width=ww)

    out_flat = pl.pallas_call(
        kernel,
        out_shape=jax.ShapeDtypeStruct((co, nhw), jnp.float32),
        in_specs=[pl.BlockSpec(memory_space=pltpu.MemorySpace.VMEM)] * 8,
        out_specs=pl.BlockSpec(memory_space=pltpu.MemorySpace.VMEM),
        scratch_shapes=[pltpu.VMEM((9 * co, nhw), jnp.bfloat16)],
        compiler_params=pltpu.CompilerParams(
            vmem_limit_bytes=32 * 1024 * 1024),
    )(xf, masks,
      w1m, g1.reshape(co, 1).astype(jnp.float32), b1.reshape(co, 1).astype(jnp.float32),
      w2m, g2.reshape(co, 1).astype(jnp.float32), b2.reshape(co, 1).astype(jnp.float32))

    return jnp.transpose(out_flat.reshape(co, n, hh, ww), (1, 0, 2, 3))


def basic_block_reference(x, w1, g1, b1, w2, g2, b2, conv_dtype=jnp.float32):
    """Pure-JAX reference (PyTorch BasicBlock, training-mode BatchNorm).

    conv_dtype=bfloat16 reproduces the kernel's bf16 matmul-operand rounding
    (operands rounded to bf16, products/accumulation in f32)."""
    def conv3x3(a, w):
        a = a.astype(conv_dtype).astype(jnp.float32)
        w = w.astype(conv_dtype).astype(jnp.float32)
        return lax.conv_general_dilated(
            a, w, window_strides=(1, 1), padding=((1, 1), (1, 1)),
            dimension_numbers=("NCHW", "OIHW", "NCHW"),
            precision=lax.Precision.HIGHEST)

    def bn(a, g, b):
        m = jnp.mean(a, axis=(0, 2, 3), keepdims=True)
        v = jnp.mean(a * a, axis=(0, 2, 3), keepdims=True) - m * m
        return (a - m) * lax.rsqrt(v + EPS) * g[None, :, None, None] \
            + b[None, :, None, None]

    out = jnp.maximum(bn(conv3x3(x, w1), g1, b1), 0.0)
    out = bn(conv3x3(out, w2), g2, b2)
    return jnp.maximum(out + x, 0.0)


if __name__ == "__main__":
    # in_channels == out_channels, stride=1, downsample=None (identity shortcut).
    N, C, H, W = 2, 4, 16, 16

    key = jax.random.PRNGKey(0)
    kx, k1, k2, kg1, kb1, kg2, kb2 = jax.random.split(key, 7)

    x = jax.random.normal(kx, (N, C, H, W), dtype=jnp.float32)
    w1 = 0.1 * jax.random.normal(k1, (C, C, 3, 3), dtype=jnp.float32)
    w2 = 0.1 * jax.random.normal(k2, (C, C, 3, 3), dtype=jnp.float32)
    g1 = 1.0 + 0.1 * jax.random.normal(kg1, (C,), dtype=jnp.float32)
    b1 = 0.1 * jax.random.normal(kb1, (C,), dtype=jnp.float32)
    g2 = 1.0 + 0.1 * jax.random.normal(kg2, (C,), dtype=jnp.float32)
    b2 = 0.1 * jax.random.normal(kb2, (C,), dtype=jnp.float32)

    out = jax.block_until_ready(basic_block(x, w1, g1, b1, w2, g2, b2))
    assert out.shape == (N, C, H, W)

    # Tight check against a reference that mirrors the kernel's bf16 conv
    # operands (same products, f32 accumulation/BN).
    ref_bf16 = jax.block_until_ready(
        basic_block_reference(x, w1, g1, b1, w2, g2, b2, conv_dtype=jnp.bfloat16))
    assert jnp.allclose(out, ref_bf16, atol=2e-3, rtol=2e-3)

    # Sanity check against the full-f32 (PyTorch-faithful) reference; the only
    # deviation is bf16 rounding of the matmul operands.
    ref_f32 = jax.block_until_ready(
        basic_block_reference(x, w1, g1, b1, w2, g2, b2, conv_dtype=jnp.float32))
    assert float(jnp.mean(jnp.abs(out - ref_f32))) < 3e-2

    print("KERNEL_OK")
</pallas_src>

<mosaic_0001>
module attributes {stable_mosaic.version = 11 : i64} {
  func.func @_basic_block_kernel(%arg0: memref<4x512xf32, #tpu.memory_space<vmem>>, %arg1: memref<9x512xbf16, #tpu.memory_space<vmem>>, %arg2: memref<4x36xbf16, #tpu.memory_space<vmem>>, %arg3: memref<4x1xf32, #tpu.memory_space<vmem>>, %arg4: memref<4x1xf32, #tpu.memory_space<vmem>>, %arg5: memref<4x36xbf16, #tpu.memory_space<vmem>>, %arg6: memref<4x1xf32, #tpu.memory_space<vmem>>, %arg7: memref<4x1xf32, #tpu.memory_space<vmem>>, %arg8: memref<4x512xf32, #tpu.memory_space<vmem>>, %arg9: memref<36x512xbf16, #tpu.memory_space<vmem>>) attributes {dimension_semantics = [], scalar_prefetch = 0 : i64, scratch_operands = 1 : i64, tpu.core_type = #tpu.core_type<tc>} {
    %c0 = arith.constant 0 : index
    %c0_0 = arith.constant 0 : index
    %0 = vector.load %arg0[%c0, %c0_0] : memref<4x512xf32, #tpu.memory_space<vmem>>, vector<4x512xf32>
    %c0_1 = arith.constant 0 : index
    %c0_2 = arith.constant 0 : index
    %1 = vector.load %arg1[%c0_1, %c0_2] : memref<9x512xbf16, #tpu.memory_space<vmem>>, vector<9x512xbf16>
    %2 = arith.truncf %0 : vector<4x512xf32> to vector<4x512xbf16>
    %3 = vector.extract_strided_slice %2 {offsets = [0, 0], sizes = [4, 495], strides = [1, 1]} : vector<4x512xbf16> to vector<4x495xbf16>
    %4 = vector.extract_strided_slice %1 {offsets = [0, 17], sizes = [1, 495], strides = [1, 1]} : vector<9x512xbf16> to vector<1x495xbf16>
    %5 = vector.broadcast %4 : vector<1x495xbf16> to vector<4x495xbf16>
    %6 = arith.mulf %3, %5 : vector<4x495xbf16>
    %c0_3 = arith.constant 0 : index
    %c17 = arith.constant 17 : index
    %7 = vector.load %arg9[%c0_3, %c17] : memref<36x512xbf16, #tpu.memory_space<vmem>>, vector<4x495xbf16>
    tpu.vector_store %arg9[%c0_3, %c17], %6 {strides = array<i32>} : memref<36x512xbf16, #tpu.memory_space<vmem>>, vector<4x495xbf16>,
    %cst = arith.constant 0.000000e+00 : bf16
    %8 = vector.broadcast %cst : bf16 to vector<4x17xbf16>
    %c0_4 = arith.constant 0 : index
    %c0_5 = arith.constant 0 : index
    %9 = vector.load %arg9[%c0_4, %c0_5] : memref<36x512xbf16, #tpu.memory_space<vmem>>, vector<4x17xbf16>
    tpu.vector_store %arg9[%c0_4, %c0_5], %8 {strides = array<i32>} : memref<36x512xbf16, #tpu.memory_space<vmem>>, vector<4x17xbf16>,
    %10 = vector.extract_strided_slice %2 {offsets = [0, 0], sizes = [4, 496], strides = [1, 1]} : vector<4x512xbf16> to vector<4x496xbf16>
    %11 = vector.extract_strided_slice %1 {offsets = [1, 16], sizes = [1, 496], strides = [1, 1]} : vector<9x512xbf16> to vector<1x496xbf16>
    %12 = vector.broadcast %11 : vector<1x496xbf16> to vector<4x496xbf16>
    %13 = arith.mulf %10, %12 : vector<4x496xbf16>
    %c4 = arith.constant 4 : index
    %c16 = arith.constant 16 : index
    %14 = vector.load %arg9[%c4, %c16] : memref<36x512xbf16, #tpu.memory_space<vmem>>, vector<4x496xbf16>
    tpu.vector_store %arg9[%c4, %c16], %13 {strides = array<i32>} : memref<36x512xbf16, #tpu.memory_space<vmem>>, vector<4x496xbf16>,
    %cst_6 = arith.constant 0.000000e+00 : bf16
    %15 = vector.broadcast %cst_6 : bf16 to vector<4x16xbf16>
    %c4_7 = arith.constant 4 : index
    %c0_8 = arith.constant 0 : index
    %16 = vector.load %arg9[%c4_7, %c0_8] : memref<36x512xbf16, #tpu.memory_space<vmem>>, vector<4x16xbf16>
    tpu.vector_store %arg9[%c4_7, %c0_8], %15 {strides = array<i32>} : memref<36x512xbf16, #tpu.memory_space<vmem>>, vector<4x16xbf16>,
    %17 = vector.extract_strided_slice %2 {offsets = [0, 0], sizes = [4, 497], strides = [1, 1]} : vector<4x512xbf16> to vector<4x497xbf16>
    %18 = vector.extract_strided_slice %1 {offsets = [2, 15], sizes = [1, 497], strides = [1, 1]} : vector<9x512xbf16> to vector<1x497xbf16>
    %19 = vector.broadcast %18 : vector<1x497xbf16> to vector<4x497xbf16>
    %20 = arith.mulf %17, %19 : vector<4x497xbf16>
    %c8 = arith.constant 8 : index
    %c15 = arith.constant 15 : index
    %21 = vector.load %arg9[%c8, %c15] : memref<36x512xbf16, #tpu.memory_space<vmem>>, vector<4x497xbf16>
    tpu.vector_store %arg9[%c8, %c15], %20 {strides = array<i32>} : memref<36x512xbf16, #tpu.memory_space<vmem>>, vector<4x497xbf16>,
    %cst_9 = arith.constant 0.000000e+00 : bf16
    %22 = vector.broadcast %cst_9 : bf16 to vector<4x15xbf16>
    %c8_10 = arith.constant 8 : index
    %c0_11 = arith.constant 0 : index
    %23 = vector.load %arg9[%c8_10, %c0_11] : memref<36x512xbf16, #tpu.memory_space<vmem>>, vector<4x15xbf16>
    tpu.vector_store %arg9[%c8_10, %c0_11], %22 {strides = array<i32>} : memref<36x512xbf16, #tpu.memory_space<vmem>>, vector<4x15xbf16>,
    %24 = vector.extract_strided_slice %2 {offsets = [0, 0], sizes = [4, 511], strides = [1, 1]} : vector<4x512xbf16> to vector<4x511xbf16>
    %25 = vector.extract_strided_slice %1 {offsets = [3, 1], sizes = [1, 511], strides = [1, 1]} : vector<9x512xbf16> to vector<1x511xbf16>
    %26 = vector.broadcast %25 : vector<1x511xbf16> to vector<4x511xbf16>
    %27 = arith.mulf %24, %26 : vector<4x511xbf16>
    %c12 = arith.constant 12 : index
    %c1 = arith.constant 1 : index
    %28 = vector.load %arg9[%c12, %c1] : memref<36x512xbf16, #tpu.memory_space<vmem>>, vector<4x511xbf16>
    tpu.vector_store %arg9[%c12, %c1], %27 {strides = array<i32>} : memref<36x512xbf16, #tpu.memory_space<vmem>>, vector<4x511xbf16>,
    %cst_12 = arith.constant 0.000000e+00 : bf16
    %29 = vector.broadcast %cst_12 : bf16 to vector<4x1xbf16>
    %c12_13 = arith.constant 12 : index
    %c0_14 = arith.constant 0 : index
    %30 = vector.load %arg9[%c12_13, %c0_14] : memref<36x512xbf16, #tpu.memory_space<vmem>>, vector<4x1xbf16>
    tpu.vector_store %arg9[%c12_13, %c0_14], %29 {strides = array<i32>} : memref<36x512xbf16, #tpu.memory_space<vmem>>, vector<4x1xbf16>,
    %c16_15 = arith.constant 16 : index
    %c0_16 = arith.constant 0 : index
    %31 = vector.load %arg9[%c16_15, %c0_16] : memref<36x512xbf16, #tpu.memory_space<vmem>>, vector<4x512xbf16>
    tpu.vector_store %arg9[%c16_15, %c0_16], %2 {strides = array<i32>} : memref<36x512xbf16, #tpu.memory_space<vmem>>, vector<4x512xbf16>,
    %32 = vector.extract_strided_slice %2 {offsets = [0, 1], sizes = [4, 511], strides = [1, 1]} : vector<4x512xbf16> to vector<4x511xbf16>
    %33 = vector.extract_strided_slice %1 {offsets = [5, 0], sizes = [1, 511], strides = [1, 1]} : vector<9x512xbf16> to vector<1x511xbf16>
    %34 = vector.broadcast %33 : vector<1x511xbf16> to vector<4x511xbf16>
    %35 = arith.mulf %32, %34 : vector<4x511xbf16>
    %c20 = arith.constant 20 : index
    %c0_17 = arith.constant 0 : index
    %36 = vector.load %arg9[%c20, %c0_17] : memref<36x512xbf16, #tpu.memory_space<vmem>>, vector<4x511xbf16>
    tpu.vector_store %arg9[%c20, %c0_17], %35 {strides = array<i32>} : memref<36x512xbf16, #tpu.memory_space<vmem>>, vector<4x511xbf16>,
    %cst_18 = arith.constant 0.000000e+00 : bf16
    %37 = vector.broadcast %cst_18 : bf16 to vector<4x1xbf16>
    %c20_19 = arith.constant 20 : index
    %c511 = arith.constant 511 : index
    %38 = vector.load %arg9[%c20_19, %c511] : memref<36x512xbf16, #tpu.memory_space<vmem>>, vector<4x1xbf16>
    tpu.vector_store %arg9[%c20_19, %c511], %37 {strides = array<i32>} : memref<36x512xbf16, #tpu.memory_space<vmem>>, vector<4x1xbf16>,
    %39 = vector.extract_strided_slice %2 {offsets = [0, 15], sizes = [4, 497], strides = [1, 1]} : vector<4x512xbf16> to vector<4x497xbf16>
    %40 = vector.extract_strided_slice %1 {offsets = [6, 0], sizes = [1, 497], strides = [1, 1]} : vector<9x512xbf16> to vector<1x497xbf16>
    %41 = vector.broadcast %40 : vector<1x497xbf16> to vector<4x497xbf16>
    %42 = arith.mulf %39, %41 : vector<4x497xbf16>
    %c24 = arith.constant 24 : index
    %c0_20 = arith.constant 0 : index
    %43 = vector.load %arg9[%c24, %c0_20] : memref<36x512xbf16, #tpu.memory_space<vmem>>, vector<4x497xbf16>
    tpu.vector_store %arg9[%c24, %c0_20], %42 {strides = array<i32>} : memref<36x512xbf16, #tpu.memory_space<vmem>>, vector<4x497xbf16>,
    %cst_21 = arith.constant 0.000000e+00 : bf16
    %44 = vector.broadcast %cst_21 : bf16 to vector<4x15xbf16>
    %c24_22 = arith.constant 24 : index
    %c497 = arith.constant 497 : index
    %45 = vector.load %arg9[%c24_22, %c497] : memref<36x512xbf16, #tpu.memory_space<vmem>>, vector<4x15xbf16>
    tpu.vector_store %arg9[%c24_22, %c497], %44 {strides = array<i32>} : memref<36x512xbf16, #tpu.memory_space<vmem>>, vector<4x15xbf16>,
    %46 = vector.extract_strided_slice %2 {offsets = [0, 16], sizes = [4, 496], strides = [1, 1]} : vector<4x512xbf16> to vector<4x496xbf16>
    %47 = vector.extract_strided_slice %1 {offsets = [7, 0], sizes = [1, 496], strides = [1, 1]} : vector<9x512xbf16> to vector<1x496xbf16>
    %48 = vector.broadcast %47 : vector<1x496xbf16> to vector<4x496xbf16>
    %49 = arith.mulf %46, %48 : vector<4x496xbf16>
    %c28 = arith.constant 28 : index
    %c0_23 = arith.constant 0 : index
    %50 = vector.load %arg9[%c28, %c0_23] : memref<36x512xbf16, #tpu.memory_space<vmem>>, vector<4x496xbf16>
    tpu.vector_store %arg9[%c28, %c0_23], %49 {strides = array<i32>} : memref<36x512xbf16, #tpu.memory_space<vmem>>, vector<4x496xbf16>,
    %cst_24 = arith.constant 0.000000e+00 : bf16
    %51 = vector.broadcast %cst_24 : bf16 to vector<4x16xbf16>
    %c28_25 = arith.constant 28 : index
    %c496 = arith.constant 496 : index
    %52 = vector.load %arg9[%c28_25, %c496] : memref<36x512xbf16, #tpu.memory_space<vmem>>, vector<4x16xbf16>
    tpu.vector_store %arg9[%c28_25, %c496], %51 {strides = array<i32>} : memref<36x512xbf16, #tpu.memory_space<vmem>>, vector<4x16xbf16>,
    %53 = vector.extract_strided_slice %2 {offsets = [0, 17], sizes = [4, 495], strides = [1, 1]} : vector<4x512xbf16> to vector<4x495xbf16>
    %54 = vector.extract_strided_slice %1 {offsets = [8, 0], sizes = [1, 495], strides = [1, 1]} : vector<9x512xbf16> to vector<1x495xbf16>
    %55 = vector.broadcast %54 : vector<1x495xbf16> to vector<4x495xbf16>
    %56 = arith.mulf %53, %55 : vector<4x495xbf16>
    %c32 = arith.constant 32 : index
    %c0_26 = arith.constant 0 : index
    %57 = vector.load %arg9[%c32, %c0_26] : memref<36x512xbf16, #tpu.memory_space<vmem>>, vector<4x495xbf16>
    tpu.vector_store %arg9[%c32, %c0_26], %56 {strides = array<i32>} : memref<36x512xbf16, #tpu.memory_space<vmem>>, vector<4x495xbf16>,
    %cst_27 = arith.constant 0.000000e+00 : bf16
    %58 = vector.broadcast %cst_27 : bf16 to vector<4x17xbf16>
    %c32_28 = arith.constant 32 : index
    %c495 = arith.constant 495 : index
    %59 = vector.load %arg9[%c32_28, %c495] : memref<36x512xbf16, #tpu.memory_space<vmem>>, vector<4x17xbf16>
    tpu.vector_store %arg9[%c32_28, %c495], %58 {strides = array<i32>} : memref<36x512xbf16, #tpu.memory_space<vmem>>, vector<4x17xbf16>,
    %c0_29 = arith.constant 0 : index
    %c0_30 = arith.constant 0 : index
    %60 = vector.load %arg2[%c0_29, %c0_30] : memref<4x36xbf16, #tpu.memory_space<vmem>>, vector<4x36xbf16>
    %c0_31 = arith.constant 0 : index
    %c0_32 = arith.constant 0 : index
    %61 = vector.load %arg9[%c0_31, %c0_32] : memref<36x512xbf16, #tpu.memory_space<vmem>>, vector<36x512xbf16>
    %cst_33 = arith.constant dense<0.000000e+00> : vector<4x512xf32>
    %62 = tpu.matmul %60, %61, %cst_33 {dimension_numbers = #tpu.dot_dimension_numbers<[1], [0], [0], [1], [0, 0, 1, 1], [], []>} : vector<4x36xbf16>, vector<36x512xbf16>, vector<4x512xf32> -> vector<4x512xf32>
    %cst_34 = arith.constant dense<0.000000e+00> : vector<4xf32>
    %63 = vector.multi_reduction <add>, %62, %cst_34 [1] : vector<4x512xf32> to vector<4xf32>
    %64 = vector.shape_cast %63 : vector<4xf32> to vector<4x1xf32>
    %65 = arith.mulf %62, %62 : vector<4x512xf32>
    %cst_35 = arith.constant dense<0.000000e+00> : vector<4xf32>
    %66 = vector.multi_reduction <add>, %65, %cst_35 [1] : vector<4x512xf32> to vector<4xf32>
    %67 = vector.shape_cast %66 : vector<4xf32> to vector<4x1xf32>
    %cst_36 = arith.constant 0.001953125 : f32
    %68 = vector.broadcast %cst_36 : f32 to vector<4x1xf32>
    %69 = arith.mulf %64, %68 : vector<4x1xf32>
    %cst_37 = arith.constant 0.001953125 : f32
    %70 = vector.broadcast %cst_37 : f32 to vector<4x1xf32>
    %71 = arith.mulf %67, %70 : vector<4x1xf32>
    %72 = arith.mulf %69, %69 : vector<4x1xf32>
    %73 = arith.subf %71, %72 : vector<4x1xf32>
    %74 = vector.broadcast %69 : vector<4x1xf32> to vector<4x512xf32>
    %75 = arith.subf %62, %74 : vector<4x512xf32>
    %cst_38 = arith.constant 9.99999974E-6 : f32
    %76 = vector.broadcast %cst_38 : f32 to vector<4x1xf32>
    %77 = arith.addf %73, %76 : vector<4x1xf32>
    %78 = math.rsqrt %77 : vector<4x1xf32>
    %79 = vector.broadcast %78 : vector<4x1xf32> to vector<4x512xf32>
    %80 = arith.mulf %75, %79 : vector<4x512xf32>
    %c0_39 = arith.constant 0 : index
    %c0_40 = arith.constant 0 : index
    %81 = vector.load %arg3[%c0_39, %c0_40] : memref<4x1xf32, #tpu.memory_space<vmem>>, vector<4x1xf32>
    %82 = vector.broadcast %81 : vector<4x1xf32> to vector<4x512xf32>
    %83 = arith.mulf %80, %82 : vector<4x512xf32>
    %c0_41 = arith.constant 0 : index
    %c0_42 = arith.constant 0 : index
    %84 = vector.load %arg4[%c0_41, %c0_42] : memref<4x1xf32, #tpu.memory_space<vmem>>, vector<4x1xf32>
    %85 = vector.broadcast %84 : vector<4x1xf32> to vector<4x512xf32>
    %86 = arith.addf %83, %85 : vector<4x512xf32>
    %cst_43 = arith.constant 0.000000e+00 : f32
    %87 = vector.broadcast %cst_43 : f32 to vector<4x512xf32>
    %88 = arith.maximumf %86, %87 : vector<4x512xf32>
    %89 = arith.truncf %88 : vector<4x512xf32> to vector<4x512xbf16>
    %90 = vector.extract_strided_slice %89 {offsets = [0, 0], sizes = [4, 495], strides = [1, 1]} : vector<4x512xbf16> to vector<4x495xbf16>
    %91 = vector.extract_strided_slice %1 {offsets = [0, 17], sizes = [1, 495], strides = [1, 1]} : vector<9x512xbf16> to vector<1x495xbf16>
    %92 = vector.broadcast %91 : vector<1x495xbf16> to vector<4x495xbf16>
    %93 = arith.mulf %90, %92 : vector<4x495xbf16>
    %c0_44 = arith.constant 0 : index
    %c17_45 = arith.constant 17 : index
    %94 = vector.load %arg9[%c0_44, %c17_45] : memref<36x512xbf16, #tpu.memory_space<vmem>>, vector<4x495xbf16>
    tpu.vector_store %arg9[%c0_44, %c17_45], %93 {strides = array<i32>} : memref<36x512xbf16, #tpu.memory_space<vmem>>, vector<4x495xbf16>,
    %cst_46 = arith.constant 0.000000e+00 : bf16
    %95 = vector.broadcast %cst_46 : bf16 to vector<4x17xbf16>
    %c0_47 = arith.constant 0 : index
    %c0_48 = arith.constant 0 : index
    %96 = vector.load %arg9[%c0_47, %c0_48] : memref<36x512xbf16, #tpu.memory_space<vmem>>, vector<4x17xbf16>
    tpu.vector_store %arg9[%c0_47, %c0_48], %95 {strides = array<i32>} : memref<36x512xbf16, #tpu.memory_space<vmem>>, vector<4x17xbf16>,
    %97 = vector.extract_strided_slice %89 {offsets = [0, 0], sizes = [4, 496], strides = [1, 1]} : vector<4x512xbf16> to vector<4x496xbf16>
    %98 = vector.extract_strided_slice %1 {offsets = [1, 16], sizes = [1, 496], strides = [1, 1]} : vector<9x512xbf16> to vector<1x496xbf16>
    %99 = vector.broadcast %98 : vector<1x496xbf16> to vector<4x496xbf16>
    %100 = arith.mulf %97, %99 : vector<4x496xbf16>
    %c4_49 = arith.constant 4 : index
    %c16_50 = arith.constant 16 : index
    %101 = vector.load %arg9[%c4_49, %c16_50] : memref<36x512xbf16, #tpu.memory_space<vmem>>, vector<4x496xbf16>
    tpu.vector_store %arg9[%c4_49, %c16_50], %100 {strides = array<i32>} : memref<36x512xbf16, #tpu.memory_space<vmem>>, vector<4x496xbf16>,
    %cst_51 = arith.constant 0.000000e+00 : bf16
    %102 = vector.broadcast %cst_51 : bf16 to vector<4x16xbf16>
    %c4_52 = arith.constant 4 : index
    %c0_53 = arith.constant 0 : index
    %103 = vector.load %arg9[%c4_52, %c0_53] : memref<36x512xbf16, #tpu.memory_space<vmem>>, vector<4x16xbf16>
    tpu.vector_store %arg9[%c4_52, %c0_53], %102 {strides = array<i32>} : memref<36x512xbf16, #tpu.memory_space<vmem>>, vector<4x16xbf16>,
    %104 = vector.extract_strided_slice %89 {offsets = [0, 0], sizes = [4, 497], strides = [1, 1]} : vector<4x512xbf16> to vector<4x497xbf16>
    %105 = vector.extract_strided_slice %1 {offsets = [2, 15], sizes = [1, 497], strides = [1, 1]} : vector<9x512xbf16> to vector<1x497xbf16>
    %106 = vector.broadcast %105 : vector<1x497xbf16> to vector<4x497xbf16>
    %107 = arith.mulf %104, %106 : vector<4x497xbf16>
    %c8_54 = arith.constant 8 : index
    %c15_55 = arith.constant 15 : index
    %108 = vector.load %arg9[%c8_54, %c15_55] : memref<36x512xbf16, #tpu.memory_space<vmem>>, vector<4x497xbf16>
    tpu.vector_store %arg9[%c8_54, %c15_55], %107 {strides = array<i32>} : memref<36x512xbf16, #tpu.memory_space<vmem>>, vector<4x497xbf16>,
    %cst_56 = arith.constant 0.000000e+00 : bf16
    %109 = vector.broadcast %cst_56 : bf16 to vector<4x15xbf16>
    %c8_57 = arith.constant 8 : index
    %c0_58 = arith.constant 0 : index
    %110 = vector.load %arg9[%c8_57, %c0_58] : memref<36x512xbf16, #tpu.memory_space<vmem>>, vector<4x15xbf16>
    tpu.vector_store %arg9[%c8_57, %c0_58], %109 {strides = array<i32>} : memref<36x512xbf16, #tpu.memory_space<vmem>>, vector<4x15xbf16>,
    %111 = vector.extract_strided_slice %89 {offsets = [0, 0], sizes = [4, 511], strides = [1, 1]} : vector<4x512xbf16> to vector<4x511xbf16>
    %112 = vector.extract_strided_slice %1 {offsets = [3, 1], sizes = [1, 511], strides = [1, 1]} : vector<9x512xbf16> to vector<1x511xbf16>
    %113 = vector.broadcast %112 : vector<1x511xbf16> to vector<4x511xbf16>
    %114 = arith.mulf %111, %113 : vector<4x511xbf16>
    %c12_59 = arith.constant 12 : index
    %c1_60 = arith.constant 1 : index
    %115 = vector.load %arg9[%c12_59, %c1_60] : memref<36x512xbf16, #tpu.memory_space<vmem>>, vector<4x511xbf16>
    tpu.vector_store %arg9[%c12_59, %c1_60], %114 {strides = array<i32>} : memref<36x512xbf16, #tpu.memory_space<vmem>>, vector<4x511xbf16>,
    %cst_61 = arith.constant 0.000000e+00 : bf16
    %116 = vector.broadcast %cst_61 : bf16 to vector<4x1xbf16>
    %c12_62 = arith.constant 12 : index
    %c0_63 = arith.constant 0 : index
    %117 = vector.load %arg9[%c12_62, %c0_63] : memref<36x512xbf16, #tpu.memory_space<vmem>>, vector<4x1xbf16>
    tpu.vector_store %arg9[%c12_62, %c0_63], %116 {strides = array<i32>} : memref<36x512xbf16, #tpu.memory_space<vmem>>, vector<4x1xbf16>,
    %c16_64 = arith.constant 16 : index
    %c0_65 = arith.constant 0 : index
    %118 = vector.load %arg9[%c16_64, %c0_65] : memref<36x512xbf16, #tpu.memory_space<vmem>>, vector<4x512xbf16>
    tpu.vector_store %arg9[%c16_64, %c0_65], %89 {strides = array<i32>} : memref<36x512xbf16, #tpu.memory_space<vmem>>, vector<4x512xbf16>,
    %119 = vector.extract_strided_slice %89 {offsets = [0, 1], sizes = [4, 511], strides = [1, 1]} : vector<4x512xbf16> to vector<4x511xbf16>
    %120 = vector.extract_strided_slice %1 {offsets = [5, 0], sizes = [1, 511], strides = [1, 1]} : vector<9x512xbf16> to vector<1x511xbf16>
    %121 = vector.broadcast %120 : vector<1x511xbf16> to vector<4x511xbf16>
    %122 = arith.mulf %119, %121 : vector<4x511xbf16>
    %c20_66 = arith.constant 20 : index
    %c0_67 = arith.constant 0 : index
    %123 = vector.load %arg9[%c20_66, %c0_67] : memref<36x512xbf16, #tpu.memory_space<vmem>>, vector<4x511xbf16>
    tpu.vector_store %arg9[%c20_66, %c0_67], %122 {strides = array<i32>} : memref<36x512xbf16, #tpu.memory_space<vmem>>, vector<4x511xbf16>,
    %cst_68 = arith.constant 0.000000e+00 : bf16
    %124 = vector.broadcast %cst_68 : bf16 to vector<4x1xbf16>
    %c20_69 = arith.constant 20 : index
    %c511_70 = arith.constant 511 : index
    %125 = vector.load %arg9[%c20_69, %c511_70] : memref<36x512xbf16, #tpu.memory_space<vmem>>, vector<4x1xbf16>
    tpu.vector_store %arg9[%c20_69, %c511_70], %124 {strides = array<i32>} : memref<36x512xbf16, #tpu.memory_space<vmem>>, vector<4x1xbf16>,
    %126 = vector.extract_strided_slice %89 {offsets = [0, 15], sizes = [4, 497], strides = [1, 1]} : vector<4x512xbf16> to vector<4x497xbf16>
    %127 = vector.extract_strided_slice %1 {offsets = [6, 0], sizes = [1, 497], strides = [1, 1]} : vector<9x512xbf16> to vector<1x497xbf16>
    %128 = vector.broadcast %127 : vector<1x497xbf16> to vector<4x497xbf16>
    %129 = arith.mulf %126, %128 : vector<4x497xbf16>
    %c24_71 = arith.constant 24 : index
    %c0_72 = arith.constant 0 : index
    %130 = vector.load %arg9[%c24_71, %c0_72] : memref<36x512xbf16, #tpu.memory_space<vmem>>, vector<4x497xbf16>
    tpu.vector_store %arg9[%c24_71, %c0_72], %129 {strides = array<i32>} : memref<36x512xbf16, #tpu.memory_space<vmem>>, vector<4x497xbf16>,
    %cst_73 = arith.constant 0.000000e+00 : bf16
    %131 = vector.broadcast %cst_73 : bf16 to vector<4x15xbf16>
    %c24_74 = arith.constant 24 : index
    %c497_75 = arith.constant 497 : index
    %132 = vector.load %arg9[%c24_74, %c497_75] : memref<36x512xbf16, #tpu.memory_space<vmem>>, vector<4x15xbf16>
    tpu.vector_store %arg9[%c24_74, %c497_75], %131 {strides = array<i32>} : memref<36x512xbf16, #tpu.memory_space<vmem>>, vector<4x15xbf16>,
    %133 = vector.extract_strided_slice %89 {offsets = [0, 16], sizes = [4, 496], strides = [1, 1]} : vector<4x512xbf16> to vector<4x496xbf16>
    %134 = vector.extract_strided_slice %1 {offsets = [7, 0], sizes = [1, 496], strides = [1, 1]} : vector<9x512xbf16> to vector<1x496xbf16>
    %135 = vector.broadcast %134 : vector<1x496xbf16> to vector<4x496xbf16>
    %136 = arith.mulf %133, %135 : vector<4x496xbf16>
    %c28_76 = arith.constant 28 : index
    %c0_77 = arith.constant 0 : index
    %137 = vector.load %arg9[%c28_76, %c0_77] : memref<36x512xbf16, #tpu.memory_space<vmem>>, vector<4x496xbf16>
    tpu.vector_store %arg9[%c28_76, %c0_77], %136 {strides = array<i32>} : memref<36x512xbf16, #tpu.memory_space<vmem>>, vector<4x496xbf16>,
    %cst_78 = arith.constant 0.000000e+00 : bf16
    %138 = vector.broadcast %cst_78 : bf16 to vector<4x16xbf16>
    %c28_79 = arith.constant 28 : index
    %c496_80 = arith.constant 496 : index
    %139 = vector.load %arg9[%c28_79, %c496_80] : memref<36x512xbf16, #tpu.memory_space<vmem>>, vector<4x16xbf16>
    tpu.vector_store %arg9[%c28_79, %c496_80], %138 {strides = array<i32>} : memref<36x512xbf16, #tpu.memory_space<vmem>>, vector<4x16xbf16>,
    %140 = vector.extract_strided_slice %89 {offsets = [0, 17], sizes = [4, 495], strides = [1, 1]} : vector<4x512xbf16> to vector<4x495xbf16>
    %141 = vector.extract_strided_slice %1 {offsets = [8, 0], sizes = [1, 495], strides = [1, 1]} : vector<9x512xbf16> to vector<1x495xbf16>
    %142 = vector.broadcast %141 : vector<1x495xbf16> to vector<4x495xbf16>
    %143 = arith.mulf %140, %142 : vector<4x495xbf16>
    %c32_81 = arith.constant 32 : index
    %c0_82 = arith.constant 0 : index
    %144 = vector.load %arg9[%c32_81, %c0_82] : memref<36x512xbf16, #tpu.memory_space<vmem>>, vector<4x495xbf16>
    tpu.vector_store %arg9[%c32_81, %c0_82], %143 {strides = array<i32>} : memref<36x512xbf16, #tpu.memory_space<vmem>>, vector<4x495xbf16>,
    %cst_83 = arith.constant 0.000000e+00 : bf16
    %145 = vector.broadcast %cst_83 : bf16 to vector<4x17xbf16>
    %c32_84 = arith.constant 32 : index
    %c495_85 = arith.constant 495 : index
    %146 = vector.load %arg9[%c32_84, %c495_85] : memref<36x512xbf16, #tpu.memory_space<vmem>>, vector<4x17xbf16>
    tpu.vector_store %arg9[%c32_84, %c495_85], %145 {strides = array<i32>} : memref<36x512xbf16, #tpu.memory_space<vmem>>, vector<4x17xbf16>,
    %c0_86 = arith.constant 0 : index
    %c0_87 = arith.constant 0 : index
    %147 = vector.load %arg5[%c0_86, %c0_87] : memref<4x36xbf16, #tpu.memory_space<vmem>>, vector<4x36xbf16>
    %c0_88 = arith.constant 0 : index
    %c0_89 = arith.constant 0 : index
    %148 = vector.load %arg9[%c0_88, %c0_89] : memref<36x512xbf16, #tpu.memory_space<vmem>>, vector<36x512xbf16>
    %cst_90 = arith.constant dense<0.000000e+00> : vector<4x512xf32>
    %149 = tpu.matmul %147, %148, %cst_90 {dimension_numbers = #tpu.dot_dimension_numbers<[1], [0], [0], [1], [0, 0, 1, 1], [], []>} : vector<4x36xbf16>, vector<36x512xbf16>, vector<4x512xf32> -> vector<4x512xf32>
    %cst_91 = arith.constant dense<0.000000e+00> : vector<4xf32>
    %150 = vector.multi_reduction <add>, %149, %cst_91 [1] : vector<4x512xf32> to vector<4xf32>
    %151 = vector.shape_cast %150 : vector<4xf32> to vector<4x1xf32>
    %152 = arith.mulf %149, %149 : vector<4x512xf32>
    %cst_92 = arith.constant dense<0.000000e+00> : vector<4xf32>
    %153 = vector.multi_reduction <add>, %152, %cst_92 [1] : vector<4x512xf32> to vector<4xf32>
    %154 = vector.shape_cast %153 : vector<4xf32> to vector<4x1xf32>
    %cst_93 = arith.constant 0.001953125 : f32
    %155 = vector.broadcast %cst_93 : f32 to vector<4x1xf32>
    %156 = arith.mulf %151, %155 : vector<4x1xf32>
    %cst_94 = arith.constant 0.001953125 : f32
    %157 = vector.broadcast %cst_94 : f32 to vector<4x1xf32>
    %158 = arith.mulf %154, %157 : vector<4x1xf32>
    %159 = arith.mulf %156, %156 : vector<4x1xf32>
    %160 = arith.subf %158, %159 : vector<4x1xf32>
    %161 = vector.broadcast %156 : vector<4x1xf32> to vector<4x512xf32>
    %162 = arith.subf %149, %161 : vector<4x512xf32>
    %cst_95 = arith.constant 9.99999974E-6 : f32
    %163 = vector.broadcast %cst_95 : f32 to vector<4x1xf32>
    %164 = arith.addf %160, %163 : vector<4x1xf32>
    %165 = math.rsqrt %164 : vector<4x1xf32>
    %166 = vector.broadcast %165 : vector<4x1xf32> to vector<4x512xf32>
    %167 = arith.mulf %162, %166 : vector<4x512xf32>
    %c0_96 = arith.constant 0 : index
    %c0_97 = arith.constant 0 : index
    %168 = vector.load %arg6[%c0_96, %c0_97] : memref<4x1xf32, #tpu.memory_space<vmem>>, vector<4x1xf32>
    %169 = vector.broadcast %168 : vector<4x1xf32> to vector<4x512xf32>
    %170 = arith.mulf %167, %169 : vector<4x512xf32>
    %c0_98 = arith.constant 0 : index
    %c0_99 = arith.constant 0 : index
    %171 = vector.load %arg7[%c0_98, %c0_99] : memref<4x1xf32, #tpu.memory_space<vmem>>, vector<4x1xf32>
    %172 = vector.broadcast %171 : vector<4x1xf32> to vector<4x512xf32>
    %173 = arith.addf %170, %172 : vector<4x512xf32>
    %174 = arith.addf %173, %0 : vector<4x512xf32>
    %cst_100 = arith.constant 0.000000e+00 : f32
    %175 = vector.broadcast %cst_100 : f32 to vector<4x512xf32>
    %176 = arith.maximumf %174, %175 : vector<4x512xf32>
    %c0_101 = arith.constant 0 : index
    %c0_102 = arith.constant 0 : index
    %177 = vector.load %arg8[%c0_101, %c0_102] : memref<4x512xf32, #tpu.memory_space<vmem>>, vector<4x512xf32>
    tpu.vector_store %arg8[%c0_101, %c0_102], %176 {strides = array<i32>} : memref<4x512xf32, #tpu.memory_space<vmem>>, vector<4x512xf32>,
    return
  }
}

</mosaic_0001>

<llo_original>
// kernel: tpu_custom_call.1
$region0: #{tpu_custom_call.1}
  #allocation0 [shape = 'u32[]', space=smem, size = 0x4, offset = 0x4, fixed_abs, tag = 'smem constant byte address 0x4 - core index']
  #allocation1 [shape = 'u32[72,128]{1,0:T(1,128)}', space=vmem, size = 0x9000, scoped, tag = 'internal scratch']
  #allocation2 [shape = 'bf16[36,512]{1,0:T(8,128)(2,1)}', space=vmem, size = 0xa000, scoped, tag = 'scratch operand']
  %s0 = inlined_call_operand.hbm [shape: f32[4,512], index: 0, kind: input, shape index: {}]
  %s1 = inlined_call_operand.hbm [shape: bf16[9,512], index: 1, kind: input, shape index: {}]
  %s2 = inlined_call_operand.vmem [shape: bf16[4,36], index: 2, kind: input, shape index: {}]
  %s3 = inlined_call_operand.vmem [shape: f32[4,1], index: 3, kind: input, shape index: {}]
  %s4 = inlined_call_operand.vmem [shape: f32[4,1], index: 4, kind: input, shape index: {}]
  %s5 = inlined_call_operand.vmem [shape: bf16[4,36], index: 5, kind: input, shape index: {}]
  %s6 = inlined_call_operand.vmem [shape: f32[4,1], index: 6, kind: input, shape index: {}]
  %s7 = inlined_call_operand.vmem [shape: f32[4,1], index: 7, kind: input, shape index: {}]
  %s8 = inlined_call_operand.hbm [shape: f32[4,512], index: 8, kind: output, shape index: {}]
  %s9 = sld [smem:[#allocation0]]
  $region50: #{tpu_custom_call.1} parent=0
    _
  %s11 = ssub.s32 1, %s9
  %s12 = scalar_select 0, %s11, %s9
  $region1: #{tpu_custom_call.1} parent=0
    #allocation3 [shape = 'u8[8192]{0}', space=vmem, size = 0x2000, scoped, tag = 'input window, operand 0, single buffered']
    #allocation4 [shape = 's32[1]{0}', space=sflag, size = 0x4, scoped, tag = 'scoped memory for tpu_custom_call.1']
    #allocation5 [shape = 's32[1]{0}', space=sflag, size = 0x4, scoped, tag = 'scoped memory for tpu_custom_call.1']
    #allocation6 [shape = 'u8[16384]{0}', space=vmem, size = 0x4000, scoped, tag = 'input window, operand 1, single buffered']
    #allocation7 [shape = 's32[1]{0}', space=sflag, size = 0x4, scoped, tag = 'scoped memory for tpu_custom_call.1']
    #allocation8 [shape = 'u8[8192]{0}', space=vmem, size = 0x2000, scoped, tag = 'output window, operand 0, single buffered']
    %13 = vsyncpa [#allocation4], 0
    %14 = vsyncpa [#allocation7], 0
    %15 = vsyncpa [#allocation5], 0
    // Predicated region
    $region2: #{tpu_custom_call.1} parent=1 // pred_check
      _
    $region3: #{tpu_custom_call.1} parent=1 // pred_check_branch
      %17 = sbr.rel (0) target = $region5
    $region4: #{tpu_custom_call.1} parent=1 // pred_region
      %19 = vsyncadd [#allocation4], 0
      %s21 = sshll.u32 %s0, 4
      %s22 = int_to_ptr.hbm [resolvable:$true] %s21
      %s23 = sshll.u32 [#allocation3], 4
      %s24 = int_to_ptr.vmem [resolvable:$true] %s23
      %26 = dma.hbm_to_vmem [thread:$0]  %s22, 256, %s24, [#allocation4]
    $region5: #{tpu_custom_call.1} parent=1 // pred_fallthru
      _
    // Predicated region
    $region6: #{tpu_custom_call.1} parent=1 // pred_check
      _
    $region7: #{tpu_custom_call.1} parent=1 // pred_check_branch
      %28 = sbr.rel (0) target = $region9
    $region8: #{tpu_custom_call.1} parent=1 // pred_region
      %30 = vsyncadd [#allocation7], 0
      %s31 = sshll.u32 %s1, 4
      %s32 = int_to_ptr.hbm [resolvable:$true] %s31
      %s33 = sshll.u32 [#allocation6], 4
      %s34 = int_to_ptr.vmem [resolvable:$true] %s33
      %39 = dma.hbm_to_vmem [thread:$0]  %s32, 512, %s34, [#allocation7], 256, 256, 16
    $region9: #{tpu_custom_call.1} parent=1 // pred_fallthru
      _
    // Predicated region
    $region10: #{tpu_custom_call.1} parent=1 // pred_check
      _
    $region11: #{tpu_custom_call.1} parent=1 // pred_check_branch
      %41 = sbr.rel (0) target = $region13
    $region12: #{tpu_custom_call.1} parent=1 // pred_region
      _
    $region13: #{tpu_custom_call.1} parent=1 // pred_fallthru
      _
    // Predicated region
    $region14: #{tpu_custom_call.1} parent=1 // pred_check
      _
    $region15: #{tpu_custom_call.1} parent=1 // pred_check_branch
      %43 = sbr.rel (0) target = $region17
    $region16: #{tpu_custom_call.1} parent=1 // pred_region
      _
    $region17: #{tpu_custom_call.1} parent=1 // pred_fallthru
      _
    // Predicated region
    $region18: #{tpu_custom_call.1} parent=1 // pred_check
      _
    $region19: #{tpu_custom_call.1} parent=1 // pred_check_branch
      %45 = sbr.rel (0) target = $region21
    $region20: #{tpu_custom_call.1} parent=1 // pred_region
      _
    $region21: #{tpu_custom_call.1} parent=1 // pred_fallthru
      _
    // Predicated region
    $region22: #{tpu_custom_call.1} parent=1 // pred_check
      _
    $region23: #{tpu_custom_call.1} parent=1 // pred_check_branch
      %47 = sbr.rel (0) target = $region25
    $region24: #{tpu_custom_call.1} parent=1 // pred_region
      _
    $region25: #{tpu_custom_call.1} parent=1 // pred_fallthru
      _
    // Predicated region
    $region26: #{tpu_custom_call.1} parent=1 // pred_check
      _
    $region27: #{tpu_custom_call.1} parent=1 // pred_check_branch
      %49 = sbr.rel (0) target = $region29
    $region28: #{tpu_custom_call.1} parent=1 // pred_region
      _
    $region29: #{tpu_custom_call.1} parent=1 // pred_fallthru
      _
    // Predicated region
    $region30: #{tpu_custom_call.1} parent=1 // pred_check
      _
    $region31: #{tpu_custom_call.1} parent=1 // pred_check_branch
      %51 = sbr.rel (0) target = $region33
    $region32: #{tpu_custom_call.1} parent=1 // pred_region
      _
    $region33: #{tpu_custom_call.1} parent=1 // pred_fallthru
      _
    // Predicated region
    $region34: #{tpu_custom_call.1} parent=1 // pred_check
      _
    $region35: #{tpu_custom_call.1} parent=1 // pred_check_branch
      %53 = sbr.rel (0) target = $region37
    $region36: #{tpu_custom_call.1} parent=1 // pred_region
      %55 = dma.done [#allocation4], 256
    $region37: #{tpu_custom_call.1} parent=1 // pred_fallthru
      _
    // Predicated region
    $region38: #{tpu_custom_call.1} parent=1 // pred_check
      _
    $region39: #{tpu_custom_call.1} parent=1 // pred_check_branch
      %57 = sbr.rel (0) target = $region41
    $region40: #{tpu_custom_call.1} parent=1 // pred_region
      %59 = dma.done [#allocation7], 512
    $region41: #{tpu_custom_call.1} parent=1 // pred_fallthru
      _
    %v61 = vld [vmem:[#allocation3] sm:$0xff]
    %v62 = vld [vmem:[#allocation3 + $0x8] sm:$0xff]
    %v63 = vld [vmem:[#allocation6] sm:$0xff]
    %v64 = vld [vmem:[#allocation6 + $0x8] sm:$0xff]
    %v65 = vld [vmem:[#allocation6 + $0x10] sm:$0x11]
    %v66 = vld [vmem:[#allocation6 + $0x18] sm:$0x11]
    %69 = vst [vmem:[#allocation1] ss:$2 sm:$0xff] %v61
    %s70 = scalar_lea.vmem [#allocation1], 16
    %71 = vst [vmem:[%s70] ss:$2 sm:$0xff] %v62
    %v72 = vld.sshfl [vmem:[#allocation1] sm:$0xff pattern:$0x75316420]
    %v73 = vld.sshfl [vmem:[#allocation1 + $0x8] sm:$0xff pattern:$0x75316420]
    %v74 = vld.sshfl [vmem:[#allocation1 + $0x10] sm:$0xff pattern:$0x75316420]
    %v75 = vld.sshfl [vmem:[#allocation1 + $0x18] sm:$0xff pattern:$0x75316420]
    %v80 = vpack.c.bf16 %v73, %v72
    %v81 = vpack.c.bf16 %v75, %v74
    %v84 = vunpack.c.l.b16 %v63
    %v85 = vunpack.c.h.b16 %v63
    %v86 = vunpack.c.l.b16 %v64
    %v87 = vunpack.c.h.b16 %v64
    %v88 = vpack.c.b16 %v84, %v84
    %v89 = vpack.c.b16 %v85, %v85
    %v90 = vpack.c.b16 %v86, %v86
    %v91 = vpack.c.b16 %v87, %v87
    %v93 = vpack.i.b16 %v88, %v88
    %v95 = vperm.slane %v93, 0
    %v97 = vpack.i.b16 %v89, %v89
    %v99 = vperm.slane %v97, 0
    %v101 = vpack.i.b16 %v90, %v90
    %v103 = vperm.slane %v101, 0
    %v105 = vpack.i.b16 %v91, %v91
    %v107 = vperm.slane %v105, 0
    %v108 = vunpack.c.l.bf16 %v80
    %v109 = vunpack.c.h.bf16 %v80
    %v110 = vunpack.c.l.bf16 %v81
    %v111 = vunpack.c.h.bf16 %v81
    %v112 = vunpack.c.l.bf16 %v95
    %v113 = vunpack.c.l.bf16 %v99
    %v114 = vunpack.c.l.bf16 %v103
    %v115 = vunpack.c.l.bf16 %v107
    %120 = vrot.lane.b32.xlu0 %v112, 111
    %v121 = vpop.permute.xlu0 %120
    %122 = vrot.lane.b32.xlu0 %v113, 111
    %v123 = vpop.permute.xlu0 %122
    %124 = vrot.lane.b32.xlu0 %v114, 111
    %v125 = vpop.permute.xlu0 %124
    %126 = vrot.lane.b32.xlu0 %v115, 111
    %v127 = vpop.permute.xlu0 %126
    %vm128 = vcmask 908288
    %v129 = vsel %vm128, %v121, %v123
    %v130 = vsel %vm128, %v123, %v125
    %v131 = vsel %vm128, %v125, %v127
    %v136 = vmul.f32 %v108, %v129
    %v137 = vmul.f32 %v109, %v130
    %v138 = vmul.f32 %v110, %v131
    %v139 = vmul.f32 %v111, %v127
    %v140 = vpack.c.bf16 %v137, %v136
    %v141 = vpack.c.bf16 %v139, %v138
    %144 = vrot.lane.b32.xlu0 %v140, 17
    %v145 = vpop.permute.xlu0 %144
    %146 = vrot.lane.b32.xlu0 %v141, 17
    %v147 = vpop.permute.xlu0 %146
    %v148 = vrot.slane %v145, 4
    %v149 = vrot.slane %v147, 4
    %vm150 = vcmask 138240
    %v151 = vsel %vm150, %v148, %v145
    %vm152 = vcmask 1043456
    %v153 = vsel %vm152, %v148, %v149
    %v154 = vsel %vm150, %v153, %v147
    %vm157 = vcmask 1041544
    %vm158 = vcmask 1045508
    %vm159 = vmor %vm158, %vm157
    %160 = vst.msk [vmem:[#allocation2] sm:$0x33] %vm159, %v151
    %161 = vst [vmem:[#allocation2 + $0x8] sm:$0x33] %v154
    %vm162 = vcmask 132096
    %163 = vst.msk [vmem:[#allocation2] sm:$0x3] %vm162, 0
    %v164 = vshrl.u32 %v88, 16
    %v165 = vpack.i.b16 %v164, %v164
    %v167 = vperm.slane %v165, 0
    %v168 = vshrl.u32 %v89, 16
    %v169 = vpack.i.b16 %v168, %v168
    %v171 = vperm.slane %v169, 0
    %v172 = vshrl.u32 %v90, 16
    %v173 = vpack.i.b16 %v172, %v172
    %v175 = vperm.slane %v173, 0
    %v176 = vshrl.u32 %v91, 16
    %v177 = vpack.i.b16 %v176, %v176
    %v179 = vperm.slane %v177, 0
    %v180 = vunpack.c.l.bf16 %v167
    %v181 = vunpack.c.l.bf16 %v171
    %v182 = vunpack.c.l.bf16 %v175
    %v183 = vunpack.c.l.bf16 %v179
    %188 = vrot.lane.b32.xlu0 %v180, 112
    %v189 = vpop.permute.xlu0 %188
    %190 = vrot.lane.b32.xlu0 %v181, 112
    %v191 = vpop.permute.xlu0 %190
    %192 = vrot.lane.b32.xlu0 %v182, 112
    %v193 = vpop.permute.xlu0 %192
    %194 = vrot.lane.b32.xlu0 %v183, 112
    %v195 = vpop.permute.xlu0 %194
    %vm196 = vcmask 916480
    %v197 = vsel %vm196, %v189, %v191
    %v198 = vsel %vm196, %v191, %v193
    %v199 = vsel %vm196, %v193, %v195
    %v204 = vmul.f32 %v108, %v197
    %v205 = vmul.f32 %v109, %v198
    %v206 = vmul.f32 %v110, %v199
    %v207 = vmul.f32 %v111, %v195
    %v208 = vpack.c.bf16 %v205, %v204
    %v209 = vpack.c.bf16 %v207, %v206
    %v212 = vrot.slane %v208, 6
    %v213 = vrot.slane %v209, 6
    %214 = vrot.lane.b32.xlu0 %v212, 16
    %v215 = vpop.permute.xlu0 %214
    %216 = vrot.lane.b32.xlu0 %v213, 16
    %v217 = vpop.permute.xlu0 %216
    %v218 = vrot.slane %v215, 4
    %v219 = vrot.slane %v217, 4
    %vm220 = vcmask 130048
    %v221 = vsel %vm220, %v218, %v215
    %v222 = vsel %vm152, %v218, %v219
    %v223 = vsel %vm220, %v222, %v217
    %vm226 = vcmask 1043586
    %vm227 = vcmask 1047558
    %vm228 = vmor %vm227, %vm226
    %229 = vst.msk [vmem:[#allocation2] sm:$0xcc] %vm228, %v221
    %230 = vst [vmem:[#allocation2 + $0x8] sm:$0xcc] %v223
    %vm231 = vcmask 125954
    %232 = vst.msk [vmem:[#allocation2] sm:$0xc] %vm231, 0
    %v233 = vperm.slane %v93, 1
    %v234 = vperm.slane %v97, 1
    %v235 = vperm.slane %v101, 1
    %v236 = vperm.slane %v105, 1
    %v237 = vunpack.c.l.bf16 %v233
    %v238 = vunpack.c.l.bf16 %v234
    %v239 = vunpack.c.l.bf16 %v235
    %v240 = vunpack.c.l.bf16 %v236
    %245 = vrot.lane.b32.xlu0 %v237, 113
    %v246 = vpop.permute.xlu0 %245
    %247 = vrot.lane.b32.xlu0 %v238, 113
    %v248 = vpop.permute.xlu0 %247
    %249 = vrot.lane.b32.xlu0 %v239, 113
    %v250 = vpop.permute.xlu0 %249
    %251 = vrot.lane.b32.xlu0 %v240, 113
    %v252 = vpop.permute.xlu0 %251
    %vm253 = vcmask 924672
    %v254 = vsel %vm253, %v246, %v248
    %v255 = vsel %vm253, %v248, %v250
    %v256 = vsel %vm253, %v250, %v252
    %v261 = vmul.f32 %v108, %v254
    %v262 = vmul.f32 %v109, %v255
    %v263 = vmul.f32 %v110, %v256
    %v264 = vmul.f32 %v111, %v252
    %v265 = vpack.c.bf16 %v262, %v261
    %v266 = vpack.c.bf16 %v264, %v263
    %269 = vrot.lane.b32.xlu0 %v265, 15
    %v270 = vpop.permute.xlu0 %269
    %271 = vrot.lane.b32.xlu0 %v266, 15
    %v272 = vpop.permute.xlu0 %271
    %v273 = vrot.slane %v270, 4
    %v274 = vrot.slane %v272, 4
    %vm275 = vcmask 121856
    %v276 = vsel %vm275, %v273, %v270
    %v277 = vsel %vm152, %v273, %v274
    %v278 = vsel %vm275, %v277, %v272
    %vm281 = vcmask 1041528
    %vm282 = vmor %vm158, %vm281
    %283 = vst.msk [vmem:[#allocation2 + $0x10] sm:$0x33] %vm282, %v276
    %284 = vst [vmem:[#allocation2 + $0x18] sm:$0x33] %v278
    %vm285 = vcmask 115712
    %286 = vst.msk [vmem:[#allocation2 + $0x10] sm:$0x3] %vm285, 0
    %v287 = vperm.slane %v165, 1
    %v288 = vperm.slane %v169, 1
    %v289 = vperm.slane %v173, 1
    %v290 = vperm.slane %v177, 1
    %v291 = vunpack.c.l.bf16 %v287
    %v292 = vunpack.c.l.bf16 %v288
    %v293 = vunpack.c.l.bf16 %v289
    %v294 = vunpack.c.l.bf16 %v290
    %299 = vrot.lane.b32.xlu0 %v291, 127
    %v300 = vpop.permute.xlu0 %299
    %301 = vrot.lane.b32.xlu0 %v292, 127
    %v302 = vpop.permute.xlu0 %301
    %303 = vrot.lane.b32.xlu0 %v293, 127
    %v304 = vpop.permute.xlu0 %303
    %305 = vrot.lane.b32.xlu0 %v294, 127
    %v306 = vpop.permute.xlu0 %305
    %vm307 = vcmask 1039360
    %v308 = vsel %vm307, %v300, %v302
    %v309 = vsel %vm307, %v302, %v304
    %v310 = vsel %vm307, %v304, %v306
    %v315 = vmul.f32 %v108, %v308
    %v316 = vmul.f32 %v109, %v309
    %v317 = vmul.f32 %v110, %v310
    %v318 = vmul.f32 %v111, %v306
    %v319 = vpack.c.bf16 %v316, %v315
    %v320 = vpack.c.bf16 %v318, %v317
    %v323 = vrot.slane %v319, 6
    %v324 = vrot.slane %v320, 6
    %325 = vrot.lane.b32.xlu0 %v323, 1
    %v326 = vpop.permute.xlu0 %325
    %327 = vrot.lane.b32.xlu0 %v324, 1
    %v328 = vpop.permute.xlu0 %327
    %v329 = vrot.slane %v326, 4
    %v330 = vrot.slane %v328, 4
    %vm331 = vcmask 7168
    %v332 = vsel %vm331, %v329, %v326
    %v333 = vsel %vm152, %v329, %v330
    %v334 = vsel %vm331, %v333, %v328
    %vm337 = vcmask 1043466
    %vm338 = vmor %vm227, %vm337
    %339 = vst.msk [vmem:[#allocation2 + $0x10] sm:$0xcc] %vm338, %v332
    %340 = vst [vmem:[#allocation2 + $0x18] sm:$0xcc] %v334
    %vm341 = vcmask 3074
    %342 = vst.msk [vmem:[#allocation2 + $0x10] sm:$0xc] %vm341, 0
    %343 = vst [vmem:[#allocation2 + $0x20] sm:$0x33] %v80
    %344 = vst [vmem:[#allocation2 + $0x28] sm:$0x33] %v81
    %v345 = vperm.slane %v165, 2
    %v346 = vperm.slane %v169, 2
    %v347 = vperm.slane %v173, 2
    %v348 = vperm.slane %v177, 2
    %v349 = vunpack.c.l.bf16 %v345
    %v350 = vunpack.c.l.bf16 %v346
    %v351 = vunpack.c.l.bf16 %v347
    %v352 = vunpack.c.l.bf16 %v348
    %357 = vrot.lane.b32.xlu0 %v349, 1
    %v358 = vpop.permute.xlu0 %357
    %359 = vrot.lane.b32.xlu0 %v350, 1
    %v360 = vpop.permute.xlu0 %359
    %361 = vrot.lane.b32.xlu0 %v351, 1
    %v362 = vpop.permute.xlu0 %361
    %363 = vrot.lane.b32.xlu0 %v352, 1
    %v364 = vpop.permute.xlu0 %363
    %vm365 = vcmask 7168
    %v366 = vsel %vm365, %v358, %v360
    %v367 = vsel %vm365, %v360, %v362
    %v368 = vsel %vm365, %v362, %v364
    %v373 = vmul.f32 %v108, %v358
    %v374 = vmul.f32 %v109, %v366
    %v375 = vmul.f32 %v110, %v367
    %v376 = vmul.f32 %v111, %v368
    %v377 = vpack.c.bf16 %v374, %v373
    %v378 = vpack.c.bf16 %v376, %v375
    %v381 = vrot.slane %v377, 6
    %v382 = vrot.slane %v378, 6
    %383 = vrot.lane.b32.xlu0 %v381, 127
    %v384 = vpop.permute.xlu0 %383
    %385 = vrot.lane.b32.xlu0 %v382, 127
    %v386 = vpop.permute.xlu0 %385
    %v387 = vrot.slane %v384, 4
    %v388 = vrot.slane %v386, 4
    %v389 = vsel %vm152, %v387, %v388
    %vm390 = vcmask 1039360
    %v391 = vsel %vm390, %v384, %v389
    %v392 = vsel %vm390, %v386, %v388
    %395 = vst [vmem:[#allocation2 + $0x20] sm:$0xcc] %v391
    %vm396 = vcmask 1043458
    %vm397 = vcmask 1039366
    %vm398 = vmor %vm397, %vm396
    %399 = vst.msk [vmem:[#allocation2 + $0x28] sm:$0xcc] %vm398, %v392
    %vm400 = vcmask 1044474
    %401 = vst.msk [vmem:[#allocation2 + $0x2c] sm:$0xc] %vm400, 0
    %v402 = vperm.slane %v93, 3
    %v403 = vperm.slane %v97, 3
    %v404 = vperm.slane %v101, 3
    %v405 = vperm.slane %v105, 3
    %v406 = vunpack.c.l.bf16 %v402
    %v407 = vunpack.c.l.bf16 %v403
    %v408 = vunpack.c.l.bf16 %v404
    %v409 = vunpack.c.l.bf16 %v405
    %414 = vrot.lane.b32.xlu0 %v406, 15
    %v415 = vpop.permute.xlu0 %414
    %416 = vrot.lane.b32.xlu0 %v407, 15
    %v417 = vpop.permute.xlu0 %416
    %418 = vrot.lane.b32.xlu0 %v408, 15
    %v419 = vpop.permute.xlu0 %418
    %420 = vrot.lane.b32.xlu0 %v409, 15
    %v421 = vpop.permute.xlu0 %420
    %vm422 = vcmask 121856
    %v423 = vsel %vm422, %v415, %v417
    %v424 = vsel %vm422, %v417, %v419
    %v425 = vsel %vm422, %v419, %v421
    %v430 = vmul.f32 %v108, %v415
    %v431 = vmul.f32 %v109, %v423
    %v432 = vmul.f32 %v110, %v424
    %v433 = vmul.f32 %v111, %v425
    %v434 = vpack.c.bf16 %v431, %v430
    %v435 = vpack.c.bf16 %v433, %v432
    %438 = vrot.lane.b32.xlu0 %v434, 113
    %v439 = vpop.permute.xlu0 %438
    %440 = vrot.lane.b32.xlu0 %v435, 113
    %v441 = vpop.permute.xlu0 %440
    %v442 = vrot.slane %v439, 4
    %v443 = vrot.slane %v441, 4
    %v444 = vsel %vm152, %v442, %v443
    %vm445 = vcmask 924672
    %v446 = vsel %vm445, %v439, %v444
    %v447 = vsel %vm445, %v441, %v443
    %450 = vst [vmem:[#allocation2 + $0x30] sm:$0x33] %v446
    %vm451 = vcmask 1041408
    %vm452 = vcmask 922628
    %vm453 = vmor %vm452, %vm451
    %454 = vst.msk [vmem:[#allocation2 + $0x38] sm:$0x33] %vm453, %v447
    %vm455 = vcmask 1042312
    %456 = vst.msk [vmem:[#allocation2 + $0x3c] sm:$0x3] %vm455, 0
    %v457 = vperm.slane %v165, 3
    %v458 = vperm.slane %v169, 3
    %v459 = vperm.slane %v173, 3
    %v460 = vperm.slane %v177, 3
    %v461 = vunpack.c.l.bf16 %v457
    %v462 = vunpack.c.l.bf16 %v458
    %v463 = vunpack.c.l.bf16 %v459
    %v464 = vunpack.c.l.bf16 %v460
    %469 = vrot.lane.b32.xlu0 %v461, 16
    %v470 = vpop.permute.xlu0 %469
    %471 = vrot.lane.b32.xlu0 %v462, 16
    %v472 = vpop.permute.xlu0 %471
    %473 = vrot.lane.b32.xlu0 %v463, 16
    %v474 = vpop.permute.xlu0 %473
    %475 = vrot.lane.b32.xlu0 %v464, 16
    %v476 = vpop.permute.xlu0 %475
    %vm477 = vcmask 130048
    %v478 = vsel %vm477, %v470, %v472
    %v479 = vsel %vm477, %v472, %v474
    %v480 = vsel %vm477, %v474, %v476
    %v485 = vmul.f32 %v108, %v470
    %v486 = vmul.f32 %v109, %v478
    %v487 = vmul.f32 %v110, %v479
    %v488 = vmul.f32 %v111, %v480
    %v489 = vpack.c.bf16 %v486, %v485
    %v490 = vpack.c.bf16 %v488, %v487
    %v493 = vrot.slane %v489, 6
    %v494 = vrot.slane %v490, 6
    %495 = vrot.lane.b32.xlu0 %v493, 112
    %v496 = vpop.permute.xlu0 %495
    %497 = vrot.lane.b32.xlu0 %v494, 112
    %v498 = vpop.permute.xlu0 %497
    %v499 = vrot.slane %v496, 4
    %v500 = vrot.slane %v498, 4
    %v501 = vsel %vm152, %v499, %v500
    %vm502 = vcmask 916480
    %v503 = vsel %vm502, %v496, %v501
    %v504 = vsel %vm502, %v498, %v500
    %507 = vst [vmem:[#allocation2 + $0x30] sm:$0xcc] %v503
    %vm508 = vcmask 916486
    %vm509 = vmor %vm508, %vm396
    %510 = vst.msk [vmem:[#allocation2 + $0x38] sm:$0xcc] %vm509, %v504
    %vm511 = vcmask 1044354
    %512 = vst.msk [vmem:[#allocation2 + $0x3c] sm:$0xc] %vm511, 0
    %v515 = vunpack.c.l.b16 %v65
    %v516 = vunpack.c.h.b16 %v65
    %v517 = vunpack.c.l.b16 %v66
    %v518 = vunpack.c.h.b16 %v66
    %v519 = vpack.c.b16 %v515, %v515
    %v520 = vpack.c.b16 %v516, %v516
    %v521 = vpack.c.b16 %v517, %v517
    %v522 = vpack.c.b16 %v518, %v518
    %v524 = vpack.i.b16 %v519, %v519
    %v526 = vperm.slane %v524, 0
    %v528 = vpack.i.b16 %v520, %v520
    %v530 = vperm.slane %v528, 0
    %v532 = vpack.i.b16 %v521, %v521
    %v534 = vperm.slane %v532, 0
    %v536 = vpack.i.b16 %v522, %v522
    %v538 = vperm.slane %v536, 0
    %v539 = vunpack.c.l.bf16 %v526
    %v540 = vunpack.c.l.bf16 %v530
    %v541 = vunpack.c.l.bf16 %v534
    %v542 = vunpack.c.l.bf16 %v538
    %547 = vrot.lane.b32.xlu0 %v539, 17
    %v548 = vpop.permute.xlu0 %547
    %549 = vrot.lane.b32.xlu0 %v540, 17
    %v550 = vpop.permute.xlu0 %549
    %551 = vrot.lane.b32.xlu0 %v541, 17
    %v552 = vpop.permute.xlu0 %551
    %553 = vrot.lane.b32.xlu0 %v542, 17
    %v554 = vpop.permute.xlu0 %553
    %vm555 = vcmask 138240
    %v556 = vsel %vm555, %v548, %v550
    %v557 = vsel %vm555, %v550, %v552
    %v558 = vsel %vm555, %v552, %v554
    %v563 = vmul.f32 %v108, %v548
    %v564 = vmul.f32 %v109, %v556
    %v565 = vmul.f32 %v110, %v557
    %v566 = vmul.f32 %v111, %v558
    %v567 = vpack.c.bf16 %v564, %v563
    %v568 = vpack.c.bf16 %v566, %v565
    %571 = vrot.lane.b32.xlu0 %v567, 111
    %v572 = vpop.permute.xlu0 %571
    %573 = vrot.lane.b32.xlu0 %v568, 111
    %v574 = vpop.permute.xlu0 %573
    %v575 = vrot.slane %v572, 4
    %v576 = vrot.slane %v574, 4
    %v577 = vsel %vm152, %v575, %v576
    %vm578 = vcmask 908288
    %v579 = vsel %vm578, %v572, %v577
    %v580 = vsel %vm578, %v574, %v576
    %583 = vst [vmem:[#allocation2 + $0x40] sm:$0x33] %v579
    %vm584 = vcmask 906244
    %vm585 = vmor %vm584, %vm451
    %586 = vst.msk [vmem:[#allocation2 + $0x48] sm:$0x33] %vm585, %v580
    %vm587 = vcmask 1042296
    %588 = vst.msk [vmem:[#allocation2 + $0x4c] sm:$0x3] %vm587, 0
    %v589 = vld [vmem:[%s2] sm:$0x3]
    %v590 = vld [vmem:[#allocation2] sm:$0xff]
    %v591 = vld [vmem:[#allocation2 + $0x8] sm:$0xff]
    %v592 = vld [vmem:[#allocation2 + $0x10] sm:$0xff]
    %v593 = vld [vmem:[#allocation2 + $0x18] sm:$0xff]
    %v594 = vld [vmem:[#allocation2 + $0x20] sm:$0xff]
    %v595 = vld [vmem:[#allocation2 + $0x28] sm:$0xff]
    %v596 = vld [vmem:[#allocation2 + $0x30] sm:$0xff]
    %v597 = vld [vmem:[#allocation2 + $0x38] sm:$0xff]
    %v598 = vld [vmem:[#allocation2 + $0x40] sm:$0x33]
    %v599 = vld [vmem:[#allocation2 + $0x48] sm:$0x33]
    %v610 = vunpack.c.l.b16 %v590
    %v611 = vunpack.c.h.b16 %v590
    %v612 = vunpack.c.l.b16 %v591
    %v613 = vunpack.c.h.b16 %v591
    %v614 = vunpack.c.l.b16 %v592
    %v615 = vunpack.c.h.b16 %v592
    %v616 = vunpack.c.l.b16 %v593
    %v617 = vunpack.c.h.b16 %v593
    %v618 = vunpack.c.l.b16 %v594
    %v619 = vunpack.c.h.b16 %v594
    %v620 = vunpack.c.l.b16 %v595
    %v621 = vunpack.c.h.b16 %v595
    %v622 = vunpack.c.l.b16 %v596
    %v623 = vunpack.c.h.b16 %v596
    %v624 = vunpack.c.l.b16 %v597
    %v625 = vunpack.c.h.b16 %v597
    %v626 = vunpack.c.l.b16 %v598
    %v627 = vunpack.c.h.b16 %v598
    %v628 = vunpack.c.l.b16 %v599
    %v629 = vunpack.c.h.b16 %v599
    %v630 = vpack.c.b16 %v614, %v610
    %v631 = vpack.c.b16 %v615, %v611
    %v632 = vpack.c.b16 %v616, %v612
    %v633 = vpack.c.b16 %v617, %v613
    %v634 = vpack.c.b16 %v622, %v618
    %v635 = vpack.c.b16 %v623, %v619
    %v636 = vpack.c.b16 %v624, %v620
    %v637 = vpack.c.b16 %v625, %v621
    %v638 = vpack.c.b16 %v626, %v626
    %v639 = vpack.c.b16 %v627, %v627
    %v640 = vpack.c.b16 %v628, %v628
    %v641 = vpack.c.b16 %v629, %v629
    %vm650 = vcmask 293888
    %v652 = vsel %vm650, %v589, 0
    %v655 = vsel %vm451, %v638, 0
    %v658 = vsel %vm451, %v639, 0
    %v661 = vsel %vm451, %v640, 0
    %v664 = vsel %vm451, %v641, 0
    %666 = vmatpush.bf16.msra.mxu0 0
    %667 = vmatpush.bf16.msra.mxu0 0
    %668 = vmatpush.bf16.msra.mxu0 0
    %669 = vmatpush.bf16.msra.mxu0 0
    %670 = vmatpush.bf16.msra.mxu0 0
    %671 = vmatpush.bf16.msra.mxu0 %v655
    %672 = vmatpush.bf16.msra.mxu0 %v634
    %673 = vmatpush.bf16.msra.mxu0 %v630
    %674 = vmatmul.bf16.gmra.mxu0 %v652
    %v675 = vpop.f32.mrf.mxu0
    %v676 = vadd.f32 0.0, %v675
    %v677 = vpop.f32.mrf.mxu0
    %678 = vdwg.mxu0
    %679 = vmatpush.bf16.msra.mxu0 0
    %680 = vmatpush.bf16.msra.mxu0 0
    %681 = vmatpush.bf16.msra.mxu0 0
    %682 = vmatpush.bf16.msra.mxu0 0
    %683 = vmatpush.bf16.msra.mxu0 0
    %684 = vmatpush.bf16.msra.mxu0 %v658
    %685 = vmatpush.bf16.msra.mxu0 %v635
    %686 = vmatpush.bf16.msra.mxu0 %v631
    %687 = vmatmul.bf16.gmra.mxu0 %v652
    %v688 = vpop.f32.mrf.mxu0
    %v689 = vadd.f32 0.0, %v688
    %v690 = vpop.f32.mrf.mxu0
    %691 = vdwg.mxu0
    %692 = vmatpush.bf16.msra.mxu0 0
    %693 = vmatpush.bf16.msra.mxu0 0
    %694 = vmatpush.bf16.msra.mxu0 0
    %695 = vmatpush.bf16.msra.mxu0 0
    %696 = vmatpush.bf16.msra.mxu0 0
    %697 = vmatpush.bf16.msra.mxu0 %v661
    %698 = vmatpush.bf16.msra.mxu0 %v636
    %699 = vmatpush.bf16.msra.mxu0 %v632
    %700 = vmatmul.bf16.gmra.mxu0 %v652
    %v701 = vpop.f32.mrf.mxu0
    %v702 = vadd.f32 0.0, %v701
    %v703 = vpop.f32.mrf.mxu0
    %704 = vdwg.mxu0
    %705 = vmatpush.bf16.msra.mxu0 0
    %706 = vmatpush.bf16.msra.mxu0 0
    %707 = vmatpush.bf16.msra.mxu0 0
    %708 = vmatpush.bf16.msra.mxu0 0
    %709 = vmatpush.bf16.msra.mxu0 0
    %710 = vmatpush.bf16.msra.mxu0 %v664
    %711 = vmatpush.bf16.msra.mxu0 %v637
    %712 = vmatpush.bf16.msra.mxu0 %v633
    %713 = vmatmul.bf16.gmra.mxu0 %v652
    %v714 = vpop.f32.mrf.mxu0
    %v715 = vadd.f32 0.0, %v714
    %v716 = vpop.f32.mrf.mxu0
    %717 = vdwg.mxu0
    %vm718 = vcmask 1043456
    %v719 = vsel %vm718, %v676, 0.0
    %v720 = vsel %vm718, %v689, 0.0
    %v721 = vadd.f32 %v719, %v720
    %v722 = vsel %vm718, %v702, 0.0
    %v723 = vadd.f32 %v721, %v722
    %v724 = vsel %vm718, %v715, 0.0
    %v725 = vadd.f32 %v723, %v724
    %726 = vadd.xlane.f32.xlu0 %v725
    %v727 = vpop.xlane.xlu0 %726
    %v728 = vmul.f32 %v676, %v676
    %v729 = vmul.f32 %v689, %v689
    %v730 = vmul.f32 %v702, %v702
    %v731 = vmul.f32 %v715, %v715
    %v732 = vsel %vm718, %v728, 0.0
    %v733 = vsel %vm718, %v729, 0.0
    %v734 = vadd.f32 %v732, %v733
    %v735 = vsel %vm718, %v730, 0.0
    %v736 = vadd.f32 %v734, %v735
    %v737 = vsel %vm718, %v731, 0.0
    %v738 = vadd.f32 %v736, %v737
    %739 = vadd.xlane.f32.xlu0 %v738
    %v740 = vpop.xlane.xlu0 %739
    %v741 = vmul.f32 %v727, 0.001953125
    %v742 = vmul.f32 %v740, 0.001953125
    %v743 = vmul.f32 %v741, %v741
    %v744 = vsub.f32 %v742, %v743
    %v745 = vsub.f32 %v676, %v741
    %v746 = vsub.f32 %v689, %v741
    %v747 = vsub.f32 %v702, %v741
    %v748 = vsub.f32 %v715, %v741
    %v749 = vadd.f32 %v744, 1e-05
    %v750 = vrsqrt.pop %v749
    %v751 = vmul.f32 %v750, %v749
    %v752 = vmul.f32 %v751, %v750
    %v753 = vmul.f32 0.5, %v752
    %v754 = vsub.f32 1.5, %v753
    %v755 = vmul.f32 %v750, %v754
    %vm756 = vweird.f32 %v749
    %vm757 = vweird.f32 %v750
    %vm758 = vmor %vm756, %vm757
    %v759 = vsel %vm758, %v750, %v755
    %v760 = vmul.f32 %v745, %v759
    %v761 = vmul.f32 %v746, %v759
    %v762 = vmul.f32 %v747, %v759
    %v763 = vmul.f32 %v748, %v759
    %v764 = vld [vmem:[%s3] sm:$0xf]
    %766 = vset.pattern.permute.xlu0 0
    %767 = vperm.xlu0 %766, %v764
    %v768 = vpop.permute.xlu0 %767
    %v770 = vmul.f32 %v760, %v768
    %v771 = vmul.f32 %v761, %v768
    %v772 = vmul.f32 %v762, %v768
    %v773 = vmul.f32 %v763, %v768
    %v774 = vld [vmem:[%s4] sm:$0xf]
    %776 = vset.pattern.permute.xlu0 0
    %777 = vperm.xlu0 %776, %v774
    %v778 = vpop.permute.xlu0 %777
    %v780 = vadd.f32 %v770, %v778
    %v781 = vadd.f32 %v771, %v778
    %v782 = vadd.f32 %v772, %v778
    %v783 = vadd.f32 %v773, %v778
    %v784 = vmax.f32 %v780, 0.0
    %v785 = vmax.f32 %v781, 0.0
    %v786 = vmax.f32 %v782, 0.0
    %v787 = vmax.f32 %v783, 0.0
    %v788 = vpack.c.bf16 %v785, %v784
    %v789 = vpack.c.bf16 %v787, %v786
    %v790 = vunpack.c.l.bf16 %v788
    %v791 = vunpack.c.h.bf16 %v788
    %v792 = vunpack.c.l.bf16 %v789
    %v793 = vunpack.c.h.bf16 %v789
    %v794 = vmul.f32 %v790, %v129
    %v795 = vmul.f32 %v791, %v130
    %v796 = vmul.f32 %v792, %v131
    %v797 = vmul.f32 %v793, %v127
    %v798 = vpack.c.bf16 %v795, %v794
    %v799 = vpack.c.bf16 %v797, %v796
    %802 = vrot.lane.b32.xlu0 %v798, 17
    %v803 = vpop.permute.xlu0 %802
    %804 = vrot.lane.b32.xlu0 %v799, 17
    %v805 = vpop.permute.xlu0 %804
    %v806 = vrot.slane %v803, 4
    %v807 = vrot.slane %v805, 4
    %v808 = vsel %vm150, %v806, %v803
    %v809 = vsel %vm152, %v806, %v807
    %v810 = vsel %vm150, %v809, %v805
    %813 = vst.msk [vmem:[#allocation2] sm:$0x33] %vm159, %v808
    %814 = vst [vmem:[#allocation2 + $0x8] sm:$0x33] %v810
    %815 = vst.msk [vmem:[#allocation2] sm:$0x3] %vm162, 0
    %v816 = vmul.f32 %v790, %v197
    %v817 = vmul.f32 %v791, %v198
    %v818 = vmul.f32 %v792, %v199
    %v819 = vmul.f32 %v793, %v195
    %v820 = vpack.c.bf16 %v817, %v816
    %v821 = vpack.c.bf16 %v819, %v818
    %v824 = vrot.slane %v820, 6
    %v825 = vrot.slane %v821, 6
    %826 = vrot.lane.b32.xlu0 %v824, 16
    %v827 = vpop.permute.xlu0 %826
    %828 = vrot.lane.b32.xlu0 %v825, 16
    %v829 = vpop.permute.xlu0 %828
    %v830 = vrot.slane %v827, 4
    %v831 = vrot.slane %v829, 4
    %v832 = vsel %vm220, %v830, %v827
    %v833 = vsel %vm152, %v830, %v831
    %v834 = vsel %vm220, %v833, %v829
    %837 = vst.msk [vmem:[#allocation2] sm:$0xcc] %vm228, %v832
    %838 = vst [vmem:[#allocation2 + $0x8] sm:$0xcc] %v834
    %839 = vst.msk [vmem:[#allocation2] sm:$0xc] %vm231, 0
    %v840 = vmul.f32 %v790, %v254
    %v841 = vmul.f32 %v791, %v255
    %v842 = vmul.f32 %v792, %v256
    %v843 = vmul.f32 %v793, %v252
    %v844 = vpack.c.bf16 %v841, %v840
    %v845 = vpack.c.bf16 %v843, %v842
    %848 = vrot.lane.b32.xlu0 %v844, 15
    %v849 = vpop.permute.xlu0 %848
    %850 = vrot.lane.b32.xlu0 %v845, 15
    %v851 = vpop.permute.xlu0 %850
    %v852 = vrot.slane %v849, 4
    %v853 = vrot.slane %v851, 4
    %v854 = vsel %vm275, %v852, %v849
    %v855 = vsel %vm152, %v852, %v853
    %v856 = vsel %vm275, %v855, %v851
    %859 = vst.msk [vmem:[#allocation2 + $0x10] sm:$0x33] %vm282, %v854
    %860 = vst [vmem:[#allocation2 + $0x18] sm:$0x33] %v856
    %861 = vst.msk [vmem:[#allocation2 + $0x10] sm:$0x3] %vm285, 0
    %v862 = vmul.f32 %v790, %v308
    %v863 = vmul.f32 %v791, %v309
    %v864 = vmul.f32 %v792, %v310
    %v865 = vmul.f32 %v793, %v306
    %v866 = vpack.c.bf16 %v863, %v862
    %v867 = vpack.c.bf16 %v865, %v864
    %v870 = vrot.slane %v866, 6
    %v871 = vrot.slane %v867, 6
    %872 = vrot.lane.b32.xlu0 %v870, 1
    %v873 = vpop.permute.xlu0 %872
    %874 = vrot.lane.b32.xlu0 %v871, 1
    %v875 = vpop.permute.xlu0 %874
    %v876 = vrot.slane %v873, 4
    %v877 = vrot.slane %v875, 4
    %v878 = vsel %vm331, %v876, %v873
    %v879 = vsel %vm152, %v876, %v877
    %v880 = vsel %vm331, %v879, %v875
    %883 = vst.msk [vmem:[#allocation2 + $0x10] sm:$0xcc] %vm338, %v878
    %884 = vst [vmem:[#allocation2 + $0x18] sm:$0xcc] %v880
    %885 = vst.msk [vmem:[#allocation2 + $0x10] sm:$0xc] %vm341, 0
    %886 = vst [vmem:[#allocation2 + $0x20] sm:$0x33] %v788
    %887 = vst [vmem:[#allocation2 + $0x28] sm:$0x33] %v789
    %v888 = vmul.f32 %v790, %v358
    %v889 = vmul.f32 %v791, %v366
    %v890 = vmul.f32 %v792, %v367
    %v891 = vmul.f32 %v793, %v368
    %v892 = vpack.c.bf16 %v889, %v888
    %v893 = vpack.c.bf16 %v891, %v890
    %v896 = vrot.slane %v892, 6
    %v897 = vrot.slane %v893, 6
    %898 = vrot.lane.b32.xlu0 %v896, 127
    %v899 = vpop.permute.xlu0 %898
    %900 = vrot.lane.b32.xlu0 %v897, 127
    %v901 = vpop.permute.xlu0 %900
    %v902 = vrot.slane %v899, 4
    %v903 = vrot.slane %v901, 4
    %v904 = vsel %vm152, %v902, %v903
    %v905 = vsel %vm390, %v899, %v904
    %v906 = vsel %vm390, %v901, %v903
    %909 = vst [vmem:[#allocation2 + $0x20] sm:$0xcc] %v905
    %910 = vst.msk [vmem:[#allocation2 + $0x28] sm:$0xcc] %vm398, %v906
    %911 = vst.msk [vmem:[#allocation2 + $0x2c] sm:$0xc] %vm400, 0
    %v912 = vmul.f32 %v790, %v415
    %v913 = vmul.f32 %v791, %v423
    %v914 = vmul.f32 %v792, %v424
    %v915 = vmul.f32 %v793, %v425
    %v916 = vpack.c.bf16 %v913, %v912
    %v917 = vpack.c.bf16 %v915, %v914
    %920 = vrot.lane.b32.xlu0 %v916, 113
    %v921 = vpop.permute.xlu0 %920
    %922 = vrot.lane.b32.xlu0 %v917, 113
    %v923 = vpop.permute.xlu0 %922
    %v924 = vrot.slane %v921, 4
    %v925 = vrot.slane %v923, 4
    %v926 = vsel %vm152, %v924, %v925
    %v927 = vsel %vm445, %v921, %v926
    %v928 = vsel %vm445, %v923, %v925
    %931 = vst [vmem:[#allocation2 + $0x30] sm:$0x33] %v927
    %932 = vst.msk [vmem:[#allocation2 + $0x38] sm:$0x33] %vm453, %v928
    %933 = vst.msk [vmem:[#allocation2 + $0x3c] sm:$0x3] %vm455, 0
    %v934 = vmul.f32 %v790, %v470
    %v935 = vmul.f32 %v791, %v478
    %v936 = vmul.f32 %v792, %v479
    %v937 = vmul.f32 %v793, %v480
    %v938 = vpack.c.bf16 %v935, %v934
    %v939 = vpack.c.bf16 %v937, %v936
    %v942 = vrot.slane %v938, 6
    %v943 = vrot.slane %v939, 6
    %944 = vrot.lane.b32.xlu0 %v942, 112
    %v945 = vpop.permute.xlu0 %944
    %946 = vrot.lane.b32.xlu0 %v943, 112
    %v947 = vpop.permute.xlu0 %946
    %v948 = vrot.slane %v945, 4
    %v949 = vrot.slane %v947, 4
    %v950 = vsel %vm152, %v948, %v949
    %v951 = vsel %vm502, %v945, %v950
    %v952 = vsel %vm502, %v947, %v949
    %955 = vst [vmem:[#allocation2 + $0x30] sm:$0xcc] %v951
    %956 = vst.msk [vmem:[#allocation2 + $0x38] sm:$0xcc] %vm509, %v952
    %957 = vst.msk [vmem:[#allocation2 + $0x3c] sm:$0xc] %vm511, 0
    %v958 = vmul.f32 %v790, %v548
    %v959 = vmul.f32 %v791, %v556
    %v960 = vmul.f32 %v792, %v557
    %v961 = vmul.f32 %v793, %v558
    %v962 = vpack.c.bf16 %v959, %v958
    %v963 = vpack.c.bf16 %v961, %v960
    %966 = vrot.lane.b32.xlu0 %v962, 111
    %v967 = vpop.permute.xlu0 %966
    %968 = vrot.lane.b32.xlu0 %v963, 111
    %v969 = vpop.permute.xlu0 %968
    %v970 = vrot.slane %v967, 4
    %v971 = vrot.slane %v969, 4
    %v972 = vsel %vm152, %v970, %v971
    %v973 = vsel %vm578, %v967, %v972
    %v974 = vsel %vm578, %v969, %v971
    %977 = vst [vmem:[#allocation2 + $0x40] sm:$0x33] %v973
    %978 = vst.msk [vmem:[#allocation2 + $0x48] sm:$0x33] %vm585, %v974
    %979 = vst.msk [vmem:[#allocation2 + $0x4c] sm:$0x3] %vm587, 0
    %v980 = vld [vmem:[%s5] sm:$0x3]
    %v981 = vld [vmem:[#allocation2] sm:$0xff]
    %v982 = vld [vmem:[#allocation2 + $0x8] sm:$0xff]
    %v983 = vld [vmem:[#allocation2 + $0x10] sm:$0xff]
    %v984 = vld [vmem:[#allocation2 + $0x18] sm:$0xff]
    %v985 = vld [vmem:[#allocation2 + $0x20] sm:$0xff]
    %v986 = vld [vmem:[#allocation2 + $0x28] sm:$0xff]
    %v987 = vld [vmem:[#allocation2 + $0x30] sm:$0xff]
    %v988 = vld [vmem:[#allocation2 + $0x38] sm:$0xff]
    %v989 = vld [vmem:[#allocation2 + $0x40] sm:$0x33]
    %v990 = vld [vmem:[#allocation2 + $0x48] sm:$0x33]
    %v1001 = vunpack.c.l.b16 %v981
    %v1002 = vunpack.c.h.b16 %v981
    %v1003 = vunpack.c.l.b16 %v982
    %v1004 = vunpack.c.h.b16 %v982
    %v1005 = vunpack.c.l.b16 %v983
    %v1006 = vunpack.c.h.b16 %v983
    %v1007 = vunpack.c.l.b16 %v984
    %v1008 = vunpack.c.h.b16 %v984
    %v1009 = vunpack.c.l.b16 %v985
    %v1010 = vunpack.c.h.b16 %v985
    %v1011 = vunpack.c.l.b16 %v986
    %v1012 = vunpack.c.h.b16 %v986
    %v1013 = vunpack.c.l.b16 %v987
    %v1014 = vunpack.c.h.b16 %v987
    %v1015 = vunpack.c.l.b16 %v988
    %v1016 = vunpack.c.h.b16 %v988
    %v1017 = vunpack.c.l.b16 %v989
    %v1018 = vunpack.c.h.b16 %v989
    %v1019 = vunpack.c.l.b16 %v990
    %v1020 = vunpack.c.h.b16 %v990
    %v1021 = vpack.c.b16 %v1005, %v1001
    %v1022 = vpack.c.b16 %v1006, %v1002
    %v1023 = vpack.c.b16 %v1007, %v1003
    %v1024 = vpack.c.b16 %v1008, %v1004
    %v1025 = vpack.c.b16 %v1013, %v1009
    %v1026 = vpack.c.b16 %v1014, %v1010
    %v1027 = vpack.c.b16 %v1015, %v1011
    %v1028 = vpack.c.b16 %v1016, %v1012
    %v1029 = vpack.c.b16 %v1017, %v1017
    %v1030 = vpack.c.b16 %v1018, %v1018
    %v1031 = vpack.c.b16 %v1019, %v1019
    %v1032 = vpack.c.b16 %v1020, %v1020
    %v1042 = vsel %vm650, %v980, 0
    %v1045 = vsel %vm451, %v1029, 0
    %v1048 = vsel %vm451, %v1030, 0
    %v1051 = vsel %vm451, %v1031, 0
    %v1054 = vsel %vm451, %v1032, 0
    %1056 = vmatpush.bf16.msra.mxu0 0
    %1057 = vmatpush.bf16.msra.mxu0 0
    %1058 = vmatpush.bf16.msra.mxu0 0
    %1059 = vmatpush.bf16.msra.mxu0 0
    %1060 = vmatpush.bf16.msra.mxu0 0
    %1061 = vmatpush.bf16.msra.mxu0 %v1045
    %1062 = vmatpush.bf16.msra.mxu0 %v1025
    %1063 = vmatpush.bf16.msra.mxu0 %v1021
    %1064 = vmatmul.bf16.gmra.mxu0 %v1042
    %v1065 = vpop.f32.mrf.mxu0
    %v1066 = vadd.f32 0.0, %v1065
    %v1067 = vpop.f32.mrf.mxu0
    %1068 = vdwg.mxu0
    %1069 = vmatpush.bf16.msra.mxu0 0
    %1070 = vmatpush.bf16.msra.mxu0 0
    %1071 = vmatpush.bf16.msra.mxu0 0
    %1072 = vmatpush.bf16.msra.mxu0 0
    %1073 = vmatpush.bf16.msra.mxu0 0
    %1074 = vmatpush.bf16.msra.mxu0 %v1048
    %1075 = vmatpush.bf16.msra.mxu0 %v1026
    %1076 = vmatpush.bf16.msra.mxu0 %v1022
    %1077 = vmatmul.bf16.gmra.mxu0 %v1042
    %v1078 = vpop.f32.mrf.mxu0
    %v1079 = vadd.f32 0.0, %v1078
    %v1080 = vpop.f32.mrf.mxu0
    %1081 = vdwg.mxu0
    %1082 = vmatpush.bf16.msra.mxu0 0
    %1083 = vmatpush.bf16.msra.mxu0 0
    %1084 = vmatpush.bf16.msra.mxu0 0
    %1085 = vmatpush.bf16.msra.mxu0 0
    %1086 = vmatpush.bf16.msra.mxu0 0
    %1087 = vmatpush.bf16.msra.mxu0 %v1051
    %1088 = vmatpush.bf16.msra.mxu0 %v1027
    %1089 = vmatpush.bf16.msra.mxu0 %v1023
    %1090 = vmatmul.bf16.gmra.mxu0 %v1042
    %v1091 = vpop.f32.mrf.mxu0
    %v1092 = vadd.f32 0.0, %v1091
    %v1093 = vpop.f32.mrf.mxu0
    %1094 = vdwg.mxu0
    %1095 = vmatpush.bf16.msra.mxu0 0
    %1096 = vmatpush.bf16.msra.mxu0 0
    %1097 = vmatpush.bf16.msra.mxu0 0
    %1098 = vmatpush.bf16.msra.mxu0 0
    %1099 = vmatpush.bf16.msra.mxu0 0
    %1100 = vmatpush.bf16.msra.mxu0 %v1054
    %1101 = vmatpush.bf16.msra.mxu0 %v1028
    %1102 = vmatpush.bf16.msra.mxu0 %v1024
    %1103 = vmatmul.bf16.gmra.mxu0 %v1042
    %v1104 = vpop.f32.mrf.mxu0
    %v1105 = vadd.f32 0.0, %v1104
    %v1106 = vpop.f32.mrf.mxu0
    %1107 = vdwg.mxu0
    %v1108 = vsel %vm718, %v1066, 0.0
    %v1109 = vsel %vm718, %v1079, 0.0
    %v1110 = vadd.f32 %v1108, %v1109
    %v1111 = vsel %vm718, %v1092, 0.0
    %v1112 = vadd.f32 %v1110, %v1111
    %v1113 = vsel %vm718, %v1105, 0.0
    %v1114 = vadd.f32 %v1112, %v1113
    %1115 = vadd.xlane.f32.xlu0 %v1114
    %v1116 = vpop.xlane.xlu0 %1115
    %v1117 = vmul.f32 %v1066, %v1066
    %v1118 = vmul.f32 %v1079, %v1079
    %v1119 = vmul.f32 %v1092, %v1092
    %v1120 = vmul.f32 %v1105, %v1105
    %v1121 = vsel %vm718, %v1117, 0.0
    %v1122 = vsel %vm718, %v1118, 0.0
    %v1123 = vadd.f32 %v1121, %v1122
    %v1124 = vsel %vm718, %v1119, 0.0
    %v1125 = vadd.f32 %v1123, %v1124
    %v1126 = vsel %vm718, %v1120, 0.0
    %v1127 = vadd.f32 %v1125, %v1126
    %1128 = vadd.xlane.f32.xlu0 %v1127
    %v1129 = vpop.xlane.xlu0 %1128
    %v1130 = vmul.f32 %v1116, 0.001953125
    %v1131 = vmul.f32 %v1129, 0.001953125
    %v1132 = vmul.f32 %v1130, %v1130
    %v1133 = vsub.f32 %v1131, %v1132
    %v1134 = vsub.f32 %v1066, %v1130
    %v1135 = vsub.f32 %v1079, %v1130
    %v1136 = vsub.f32 %v1092, %v1130
    %v1137 = vsub.f32 %v1105, %v1130
    %v1138 = vadd.f32 %v1133, 1e-05
    %v1139 = vrsqrt.pop %v1138
    %v1140 = vmul.f32 %v1139, %v1138
    %v1141 = vmul.f32 %v1140, %v1139
    %v1142 = vmul.f32 0.5, %v1141
    %v1143 = vsub.f32 1.5, %v1142
    %v1144 = vmul.f32 %v1139, %v1143
    %vm1145 = vweird.f32 %v1138
    %vm1146 = vweird.f32 %v1139
    %vm1147 = vmor %vm1145, %vm1146
    %v1148 = vsel %vm1147, %v1139, %v1144
    %v1149 = vmul.f32 %v1134, %v1148
    %v1150 = vmul.f32 %v1135, %v1148
    %v1151 = vmul.f32 %v1136, %v1148
    %v1152 = vmul.f32 %v1137, %v1148
    %v1153 = vld [vmem:[%s6] sm:$0xf]
    %1155 = vset.pattern.permute.xlu0 0
    %1156 = vperm.xlu0 %1155, %v1153
    %v1157 = vpop.permute.xlu0 %1156
    %v1159 = vmul.f32 %v1149, %v1157
    %v1160 = vmul.f32 %v1150, %v1157
    %v1161 = vmul.f32 %v1151, %v1157
    %v1162 = vmul.f32 %v1152, %v1157
    %v1163 = vld [vmem:[%s7] sm:$0xf]
    %1165 = vset.pattern.permute.xlu0 0
    %1166 = vperm.xlu0 %1165, %v1163
    %v1167 = vpop.permute.xlu0 %1166
    %v1169 = vadd.f32 %v1159, %v1167
    %v1170 = vadd.f32 %v1160, %v1167
    %v1171 = vadd.f32 %v1161, %v1167
    %v1172 = vadd.f32 %v1162, %v1167
    %1173 = vst [vmem:[#allocation1] ss:$2 sm:$0xff] %v61
    %s1174 = scalar_lea.vmem [#allocation1], 16
    %1175 = vst [vmem:[%s1174] ss:$2 sm:$0xff] %v62
    %v1176 = vld.sshfl [vmem:[#allocation1] sm:$0xff pattern:$0x75316420]
    %v1177 = vld.sshfl [vmem:[#allocation1 + $0x8] sm:$0xff pattern:$0x75316420]
    %v1178 = vld.sshfl [vmem:[#allocation1 + $0x10] sm:$0xff pattern:$0x75316420]
    %v1179 = vld.sshfl [vmem:[#allocation1 + $0x18] sm:$0xff pattern:$0x75316420]
    %v1184 = vadd.f32 %v1169, %v1176
    %v1185 = vadd.f32 %v1170, %v1177
    %v1186 = vadd.f32 %v1171, %v1178
    %v1187 = vadd.f32 %v1172, %v1179
    %v1188 = vmax.f32 %v1184, 0.0
    %v1189 = vmax.f32 %v1185, 0.0
    %v1190 = vmax.f32 %v1186, 0.0
    %v1191 = vmax.f32 %v1187, 0.0
    %v1196 = vrot.slane %v1189, 4
    %v1197 = vrot.slane %v1191, 4
    %v1198 = vsel %vm718, %v1188, %v1196
    %v1199 = vsel %vm718, %v1190, %v1197
    %1202 = vst [vmem:[#allocation8] sm:$0xff] %v1198
    %1203 = vst [vmem:[#allocation8 + $0x8] sm:$0xff] %v1199
    // Predicated region
    $region42: #{tpu_custom_call.1} parent=1 // pred_check
      _
    $region43: #{tpu_custom_call.1} parent=1 // pred_check_branch
      %1205 = sbr.rel (0) target = $region45
    $region44: #{tpu_custom_call.1} parent=1 // pred_region
      %1207 = vsyncadd [#allocation5], 0
      %s1209 = sshll.u32 [#allocation8], 4
      %s1210 = int_to_ptr.vmem [resolvable:$true] %s1209
      %s1211 = sshll.u32 %s8, 4
      %s1212 = int_to_ptr.hbm [resolvable:$true] %s1211
      %1214 = dma.vmem_to_hbm [thread:$0]  %s1210, 256, %s1212, [#allocation5]
    $region45: #{tpu_custom_call.1} parent=1 // pred_fallthru
      _
    // Predicated region
    $region46: #{tpu_custom_call.1} parent=1 // pred_check
      _
    $region47: #{tpu_custom_call.1} parent=1 // pred_check_branch
      %1216 = sbr.rel (0) target = $region49
    $region48: #{tpu_custom_call.1} parent=1 // pred_region
      %1218 = dma.done [#allocation5], 256
    $region49: #{tpu_custom_call.1} parent=1 // pred_fallthru
      _
    %1219 = vsyncpa [#allocation4], 1
    %1220 = vsyncpa [#allocation7], 1
    %1221 = vsyncpa [#allocation5], 1

</llo_original>
